<compile_context>
chip_gen: v6e
topology: v6e:2x2x1
jax: 0.10.0
libtpu: 0.0.40
codegen_flags: <defaults>
</compile_context>

<pallas_src>
import math

import jax
import jax.numpy as jnp
from jax import lax
from jax.experimental import pallas as pl
from jax.experimental.pallas import tpu as pltpu


def _garo_kernel(n_nodes, inv_sqrt_dk):
    """Kernel over one tile of samples: x tile (tg, N, C) -> (out (tg, C), attn (tg, N))."""
    inv_n = 1.0 / float(n_nodes)

    def kernel(x_ref, wq_ref, bq_ref, wk_ref, bk_ref, out_ref, attn_ref):
        x = x_ref[...].astype(jnp.float32)        # (tg, N, C)
        wq = wq_ref[...].astype(jnp.float32)      # (C, Cp)
        bq = bq_ref[...].astype(jnp.float32)      # (1, Cp)
        wk = wk_ref[...].astype(jnp.float32)      # (C, Cp)
        bk = bk_ref[...].astype(jnp.float32)      # (1, Cp)

        # 1) Graph-mean query embedding: x_q = mean_n(x) @ Wq + bq   -> (tg, Cp)
        x_mean = jnp.sum(x, axis=1) * inv_n
        x_q = jnp.dot(x_mean, wq, preferred_element_type=jnp.float32) + bq

        # 2) Attention logits. scores[g, n] = <x_q[g], x[g, n] @ Wk + bk>,
        #    folded so only 2-D matmuls are needed:
        #      scores = x . (x_q @ Wk^T) + x_q . bk
        v = lax.dot_general(x_q, wk, (((1,), (1,)), ((), ())),
                            preferred_element_type=jnp.float32)      # (tg, C)
        s0 = jnp.sum(x_q * bk, axis=-1, keepdims=True)               # (tg, 1)
        scores = (jnp.sum(x * v[:, None, :], axis=-1) + s0) * inv_sqrt_dk
        attn = jax.nn.sigmoid(scores)                                # (tg, N)

        # 3) Attention-weighted node mean (dropout == identity in eval mode).
        out = jnp.sum(x * attn[:, :, None], axis=1) * inv_n          # (tg, C)

        out_ref[...] = out.astype(out_ref.dtype)
        attn_ref[...] = attn.astype(attn_ref.dtype)

    return kernel


def garo_forward(x, w_q, b_q, w_k, b_k, *, node_axis=2, target_block_bytes=2 << 20):
    """Pallas implementation of ModuleGARO.forward (eval mode).

    x   : (T, B, N, C)       -- node axis must be 2 (matches the module's rearrange)
    w_q : (C, Cp), b_q: (Cp,)  (already (in, out); torch stores Linear weight transposed)
    w_k : (C, Cp), b_k: (Cp,)
    Returns (pooled (T, B, C), attention (B, T, N)).
    """
    assert x.ndim == 4 and node_axis == 2, "kernel layout assumes x is (T, B, N, C), node_axis=2"
    T, B, N, C = x.shape
    Cp = w_q.shape[1]
    G = T * B

    x_flat = x.reshape(G, N, C)

    # --- tile selection: large, byte-sized sample tiles (multiple of 8 sublanes).
    # Each x-block is ~target_block_bytes so the kernel is HBM-bandwidth bound,
    # not grid-step-overhead bound; small problems collapse to one grid step.
    # (Assumes a full (N, C) node slab fits in VMEM, true for this module's sizes.)
    per_g_bytes = N * C * x.dtype.itemsize
    tile_g = max(8, (int(target_block_bytes) // per_g_bytes) // 8 * 8)
    g_pad_min = ((G + 7) // 8) * 8
    tile_g = min(tile_g, g_pad_min)
    G_pad = ((G + tile_g - 1) // tile_g) * tile_g
    if G_pad != G:
        x_flat = jnp.pad(x_flat, ((0, G_pad - G), (0, 0), (0, 0)))

    b_q2 = b_q.reshape(1, Cp)
    b_k2 = b_k.reshape(1, Cp)

    out_flat, attn_flat = pl.pallas_call(
        _garo_kernel(N, 1.0 / math.sqrt(Cp)),
        out_shape=(
            jax.ShapeDtypeStruct((G_pad, C), x.dtype),
            jax.ShapeDtypeStruct((G_pad, N), x.dtype),
        ),
        grid_spec=pltpu.PrefetchScalarGridSpec(
            num_scalar_prefetch=0,
            grid=(G_pad // tile_g,),
            in_specs=[
                pl.BlockSpec((tile_g, N, C), lambda g: (g, 0, 0)),   # x tile (streams)
                pl.BlockSpec((C, Cp), lambda g: (0, 0)),             # Wq (resident)
                pl.BlockSpec((1, Cp), lambda g: (0, 0)),             # bq
                pl.BlockSpec((C, Cp), lambda g: (0, 0)),             # Wk
                pl.BlockSpec((1, Cp), lambda g: (0, 0)),             # bk
            ],
            out_specs=[
                pl.BlockSpec((tile_g, C), lambda g: (g, 0)),
                pl.BlockSpec((tile_g, N), lambda g: (g, 0)),
            ],
        ),
        compiler_params=pltpu.CompilerParams(
            dimension_semantics=("parallel",),      # independent sample tiles -> megacore on v7x
            vmem_limit_bytes=32 * 1024 * 1024,      # works on v5e (raises 16 MiB default) and v7x (64 MiB phys)
        ),
    )(x_flat, w_q, b_q2, w_k, b_k2)

    out = out_flat[:G].reshape(T, B, C)
    attn = attn_flat[:G].reshape(T, B, N)
    return out, jnp.transpose(attn, (1, 0, 2))      # (T,B,C), (B,T,N)


if __name__ == "__main__":
    key = jax.random.PRNGKey(0)
    k1, k2, k3, k4, k5 = jax.random.split(key, 5)

    # Small shapes consistent with the module: seq T=8, batch B=2, nodes N=16,
    # hidden C=32, upscale=1.0 -> Cp=32.
    T, B, N, C = 8, 2, 16, 32
    Cp = C
    x = jax.random.normal(k1, (T, B, N, C), dtype=jnp.float32)
    w_q = jax.random.normal(k2, (C, Cp), dtype=jnp.float32) / math.sqrt(C)
    b_q = 0.1 * jax.random.normal(k3, (Cp,), dtype=jnp.float32)
    w_k = jax.random.normal(k4, (C, Cp), dtype=jnp.float32) / math.sqrt(C)
    b_k = 0.1 * jax.random.normal(k5, (Cp,), dtype=jnp.float32)

    out, attn = garo_forward(x, w_q, b_q, w_k, b_k, node_axis=2)
    out = jax.block_until_ready(out)
    attn = jax.block_until_ready(attn)

    # Pure-JAX reference mirroring the torch module (eval mode: dropout = id).
    with jax.default_matmul_precision("highest"):
        x_q_ref = jnp.mean(x, axis=2, keepdims=True) @ w_q + b_q           # (T,B,1,Cp)
        x_k_ref = x @ w_k + b_k                                            # (T,B,N,Cp)
        logits = jnp.einsum("tbqc,tbnc->tbqn", x_q_ref, x_k_ref) / math.sqrt(Cp)
        attn_ref = jax.nn.sigmoid(logits)[:, :, 0, :]                      # (T,B,N)
        out_ref = jnp.mean(x * attn_ref[..., None], axis=2)                # (T,B,C)
        attn_ref = jnp.transpose(attn_ref, (1, 0, 2))                      # (B,T,N)

    assert out.shape == (T, B, C)
    assert attn.shape == (B, T, N)
    assert jnp.allclose(out, out_ref, atol=1e-3, rtol=1e-3), (
        "pooled output mismatch: max abs diff "
        + str(float(jnp.max(jnp.abs(out - out_ref)))))
    assert jnp.allclose(attn, attn_ref, atol=1e-3, rtol=1e-3), (
        "attention mismatch: max abs diff "
        + str(float(jnp.max(jnp.abs(attn - attn_ref)))))

    print("KERNEL_OK")
</pallas_src>

<mosaic_0001>
module attributes {stable_mosaic.version = 11 : i64} {
  func.func @kernel(%arg0: i32, %arg1: memref<16x16x32xf32, #tpu.memory_space<vmem>>, %arg2: memref<32x32xf32, #tpu.memory_space<vmem>>, %arg3: memref<1x32xf32, #tpu.memory_space<vmem>>, %arg4: memref<32x32xf32, #tpu.memory_space<vmem>>, %arg5: memref<1x32xf32, #tpu.memory_space<vmem>>, %arg6: memref<16x32xf32, #tpu.memory_space<vmem>>, %arg7: memref<16x16xf32, #tpu.memory_space<vmem>>) attributes {dimension_semantics = [#tpu.dimension_semantics<parallel>], iteration_bounds = array<i64: 1>, scalar_prefetch = 0 : i64, scratch_operands = 0 : i64, tpu.core_type = #tpu.core_type<tc>, window_params = [{transform_indices = @transform_0, window_bounds = array<i64: 16, 16, 32>}, {pipeline_mode = #tpu.pipeline_mode<synchronous>, transform_indices = @transform_1, window_bounds = array<i64: 32, 32>}, {pipeline_mode = #tpu.pipeline_mode<synchronous>, transform_indices = @transform_2, window_bounds = array<i64: 1, 32>}, {pipeline_mode = #tpu.pipeline_mode<synchronous>, transform_indices = @transform_3, window_bounds = array<i64: 32, 32>}, {pipeline_mode = #tpu.pipeline_mode<synchronous>, transform_indices = @transform_4, window_bounds = array<i64: 1, 32>}, {transform_indices = @transform_5, window_bounds = array<i64: 16, 32>}, {transform_indices = @transform_6, window_bounds = array<i64: 16, 16>}]} {
    %c0 = arith.constant 0 : index
    %c0_0 = arith.constant 0 : index
    %c0_1 = arith.constant 0 : index
    %0 = vector.load %arg1[%c0, %c0_0, %c0_1] : memref<16x16x32xf32, #tpu.memory_space<vmem>>, vector<16x16x32xf32>
    %c0_2 = arith.constant 0 : index
    %c0_3 = arith.constant 0 : index
    %1 = vector.load %arg2[%c0_2, %c0_3] : memref<32x32xf32, #tpu.memory_space<vmem>>, vector<32x32xf32>
    %c0_4 = arith.constant 0 : index
    %c0_5 = arith.constant 0 : index
    %2 = vector.load %arg3[%c0_4, %c0_5] : memref<1x32xf32, #tpu.memory_space<vmem>>, vector<1x32xf32>
    %c0_6 = arith.constant 0 : index
    %c0_7 = arith.constant 0 : index
    %3 = vector.load %arg4[%c0_6, %c0_7] : memref<32x32xf32, #tpu.memory_space<vmem>>, vector<32x32xf32>
    %c0_8 = arith.constant 0 : index
    %c0_9 = arith.constant 0 : index
    %4 = vector.load %arg5[%c0_8, %c0_9] : memref<1x32xf32, #tpu.memory_space<vmem>>, vector<1x32xf32>
    %cst = arith.constant dense<0.000000e+00> : vector<16x32xf32>
    %5 = vector.multi_reduction <add>, %0, %cst [1] : vector<16x16x32xf32> to vector<16x32xf32>
    %cst_10 = arith.constant 6.250000e-02 : f32
    %6 = vector.broadcast %cst_10 : f32 to vector<16x32xf32>
    %7 = arith.mulf %5, %6 : vector<16x32xf32>
    %cst_11 = arith.constant dense<0.000000e+00> : vector<16x32xf32>
    %8 = tpu.matmul %7, %1, %cst_11 {dimension_numbers = #tpu.dot_dimension_numbers<[1], [0], [0], [1], [0, 0, 1, 1], [], []>} : vector<16x32xf32>, vector<32x32xf32>, vector<16x32xf32> -> vector<16x32xf32>
    %9 = vector.broadcast %2 : vector<1x32xf32> to vector<16x32xf32>
    %10 = arith.addf %8, %9 : vector<16x32xf32>
    %cst_12 = arith.constant dense<0.000000e+00> : vector<16x32xf32>
    %11 = tpu.matmul %10, %3, %cst_12 {dimension_numbers = #tpu.dot_dimension_numbers<[1], [1], [0], [0], [0, 0, 1, 0], [], []>} : vector<16x32xf32>, vector<32x32xf32>, vector<16x32xf32> -> vector<16x32xf32>
    %12 = vector.broadcast %4 : vector<1x32xf32> to vector<16x32xf32>
    %13 = arith.mulf %10, %12 : vector<16x32xf32>
    %cst_13 = arith.constant dense<0.000000e+00> : vector<16xf32>
    %14 = vector.multi_reduction <add>, %13, %cst_13 [1] : vector<16x32xf32> to vector<16xf32>
    %15 = vector.shape_cast %14 : vector<16xf32> to vector<16x1xf32>
    %16 = vector.shape_cast %11 : vector<16x32xf32> to vector<16x1x32xf32>
    %17 = vector.broadcast %16 : vector<16x1x32xf32> to vector<16x16x32xf32>
    %18 = arith.mulf %0, %17 : vector<16x16x32xf32>
    %cst_14 = arith.constant dense<0.000000e+00> : vector<16x16xf32>
    %19 = vector.multi_reduction <add>, %18, %cst_14 [2] : vector<16x16x32xf32> to vector<16x16xf32>
    %20 = vector.broadcast %15 : vector<16x1xf32> to vector<16x16xf32>
    %21 = arith.addf %19, %20 : vector<16x16xf32>
    %cst_15 = arith.constant 0.176776692 : f32
    %22 = vector.broadcast %cst_15 : f32 to vector<16x16xf32>
    %23 = arith.mulf %21, %22 : vector<16x16xf32>
    %24 = arith.negf %23 : vector<16x16xf32>
    %25 = math.exp %24 : vector<16x16xf32>
    %cst_16 = arith.constant 1.000000e+00 : f32
    %26 = vector.broadcast %cst_16 : f32 to vector<16x16xf32>
    %27 = arith.addf %26, %25 : vector<16x16xf32>
    %28 = arith.divf %26, %27 : vector<16x16xf32>
    %29 = vector.shape_cast %28 : vector<16x16xf32> to vector<16x16x1xf32>
    %30 = vector.broadcast %29 : vector<16x16x1xf32> to vector<16x16x32xf32>
    %31 = arith.mulf %0, %30 : vector<16x16x32xf32>
    %cst_17 = arith.constant dense<0.000000e+00> : vector<16x32xf32>
    %32 = vector.multi_reduction <add>, %31, %cst_17 [1] : vector<16x16x32xf32> to vector<16x32xf32>
    %cst_18 = arith.constant 6.250000e-02 : f32
    %33 = vector.broadcast %cst_18 : f32 to vector<16x32xf32>
    %34 = arith.mulf %32, %33 : vector<16x32xf32>
    %c0_19 = arith.constant 0 : index
    %c0_20 = arith.constant 0 : index
    %35 = vector.load %arg6[%c0_19, %c0_20] : memref<16x32xf32, #tpu.memory_space<vmem>>, vector<16x32xf32>
    tpu.vector_store %arg6[%c0_19, %c0_20], %34 {strides = array<i32>} : memref<16x32xf32, #tpu.memory_space<vmem>>, vector<16x32xf32>,
    %c0_21 = arith.constant 0 : index
    %c0_22 = arith.constant 0 : index
    %36 = vector.load %arg7[%c0_21, %c0_22] : memref<16x16xf32, #tpu.memory_space<vmem>>, vector<16x16xf32>
    tpu.vector_store %arg7[%c0_21, %c0_22], %28 {strides = array<i32>} : memref<16x16xf32, #tpu.memory_space<vmem>>, vector<16x16xf32>,
    return
  }
  func.func @transform_0(%arg0: i32) -> (i32, i32, i32) {
    %c0_i32 = arith.constant 0 : i32
    %c0_i32_0 = arith.constant 0 : i32
    %c0_i32_1 = arith.constant 0 : i32
    return %arg0, %c0_i32, %c0_i32_0 : i32, i32, i32
  }
  func.func @transform_1(%arg0: i32) -> (i32, i32) {
    %c0_i32 = arith.constant 0 : i32
    %c0_i32_0 = arith.constant 0 : i32
    %c0_i32_1 = arith.constant 0 : i32
    return %c0_i32, %c0_i32_0 : i32, i32
  }
  func.func @transform_2(%arg0: i32) -> (i32, i32) {
    %c0_i32 = arith.constant 0 : i32
    %c0_i32_0 = arith.constant 0 : i32
    %c0_i32_1 = arith.constant 0 : i32
    return %c0_i32, %c0_i32_0 : i32, i32
  }
  func.func @transform_3(%arg0: i32) -> (i32, i32) {
    %c0_i32 = arith.constant 0 : i32
    %c0_i32_0 = arith.constant 0 : i32
    %c0_i32_1 = arith.constant 0 : i32
    return %c0_i32, %c0_i32_0 : i32, i32
  }
  func.func @transform_4(%arg0: i32) -> (i32, i32) {
    %c0_i32 = arith.constant 0 : i32
    %c0_i32_0 = arith.constant 0 : i32
    %c0_i32_1 = arith.constant 0 : i32
    return %c0_i32, %c0_i32_0 : i32, i32
  }
  func.func @transform_5(%arg0: i32) -> (i32, i32) {
    %c0_i32 = arith.constant 0 : i32
    %c0_i32_0 = arith.constant 0 : i32
    return %arg0, %c0_i32 : i32, i32
  }
  func.func @transform_6(%arg0: i32) -> (i32, i32) {
    %c0_i32 = arith.constant 0 : i32
    %c0_i32_0 = arith.constant 0 : i32
    return %arg0, %c0_i32 : i32, i32
  }
}

</mosaic_0001>

<llo_original>
// kernel: tpu_custom_call.1
$region0: #{tpu_custom_call.1}
  #allocation0 [shape = 'u32[]', space=smem, size = 0x4, offset = 0x4, fixed_abs, tag = 'smem constant byte address 0x4 - core index']
  #allocation1 [shape = 'u32[144,128]{1,0:T(1,128)}', space=vmem, size = 0x12000, scoped, tag = 'internal scratch']
  %s0 = inlined_call_operand.hbm [shape: f32[16,16,32], index: 0, kind: input, shape index: {}]
  %s1 = inlined_call_operand.hbm [shape: f32[32,32], index: 1, kind: input, shape index: {}]
  %s2 = inlined_call_operand.vmem [shape: f32[1,32], index: 2, kind: input, shape index: {}]
  %s3 = inlined_call_operand.hbm [shape: f32[32,32], index: 3, kind: input, shape index: {}]
  %s4 = inlined_call_operand.vmem [shape: f32[1,32], index: 4, kind: input, shape index: {}]
  %s5 = inlined_call_operand.hbm [shape: f32[16,32], index: 5, kind: output, shape index: {0}]
  %s6 = inlined_call_operand.hbm [shape: f32[16,16], index: 6, kind: output, shape index: {1}]
  %7 = xla_tuple %s5, %s6
  %s8 = sld [smem:[#allocation0]]
  $region50: #{tpu_custom_call.1} parent=0
    _
  %s10 = ssub.s32 1, %s8
  %s11 = scalar_select 0, %s10, %s8
  $region1: #{tpu_custom_call.1} parent=0
    #allocation2 [shape = 'u8[131072]{0}', space=vmem, size = 0x20000, scoped, tag = 'input window, operand 0, single buffered']
    #allocation3 [shape = 's32[1]{0}', space=sflag, size = 0x4, scoped, tag = 'scoped memory for tpu_custom_call.1']
    #allocation4 [shape = 's32[1]{0}', space=sflag, size = 0x4, scoped, tag = 'scoped memory for tpu_custom_call.1']
    #allocation5 [shape = 'u8[16384]{0}', space=vmem, size = 0x4000, scoped, tag = 'input window, operand 1, single buffered']
    #allocation6 [shape = 's32[1]{0}', space=sflag, size = 0x4, scoped, tag = 'scoped memory for tpu_custom_call.1']
    #allocation7 [shape = 'u8[16384]{0}', space=vmem, size = 0x4000, scoped, tag = 'input window, operand 3, single buffered']
    #allocation8 [shape = 'u8[8192]{0}', space=vmem, size = 0x2000, scoped, tag = 'output window, operand 0, single buffered']
    #allocation9 [shape = 'u8[8192]{0}', space=vmem, size = 0x2000, scoped, tag = 'output window, operand 1, single buffered']
    #allocation10 [shape = 's32[1]{0}', space=sflag, size = 0x4, scoped, tag = 'scoped memory for tpu_custom_call.1']
    %12 = vsyncpa [#allocation3], 0
    %13 = vsyncpa [#allocation6], 0
    %14 = vsyncpa [#allocation4], 0
    %15 = vsyncpa [#allocation10], 0
    // Predicated region
    $region2: #{tpu_custom_call.1} parent=1 // pred_check
      _
    $region3: #{tpu_custom_call.1} parent=1 // pred_check_branch
      %17 = sbr.rel (0) target = $region5
    $region4: #{tpu_custom_call.1} parent=1 // pred_region
      %s19 = ssub.s32 4096, 4096
      %20 = vsyncadd [#allocation3], %s19
      %s21 = sshll.u32 [#allocation2], 4
      %s22 = int_to_ptr.vmem [resolvable:$true] %s21
      %27 = dma.hbm_to_vmem [thread:$0]  %s0, 4096, %s22, [#allocation3], 128, 128, 8
    $region5: #{tpu_custom_call.1} parent=1 // pred_fallthru
      _
    // Predicated region
    $region6: #{tpu_custom_call.1} parent=1 // pred_check
      _
    $region7: #{tpu_custom_call.1} parent=1 // pred_check_branch
      %29 = sbr.rel (0) target = $region9
    $region8: #{tpu_custom_call.1} parent=1 // pred_region
      %s31 = ssub.s32 512, 512
      %32 = vsyncadd [#allocation6], %s31
      %s33 = sshll.u32 [#allocation5], 4
      %s34 = int_to_ptr.vmem [resolvable:$true] %s33
      %39 = dma.hbm_to_vmem [thread:$0]  %s1, 512, %s34, [#allocation6], 128, 128, 8
    $region9: #{tpu_custom_call.1} parent=1 // pred_fallthru
      _
    // Predicated region
    $region10: #{tpu_custom_call.1} parent=1 // pred_check
      _
    $region11: #{tpu_custom_call.1} parent=1 // pred_check_branch
      %41 = sbr.rel (0) target = $region13
    $region12: #{tpu_custom_call.1} parent=1 // pred_region
      _
    $region13: #{tpu_custom_call.1} parent=1 // pred_fallthru
      _
    // Predicated region
    $region14: #{tpu_custom_call.1} parent=1 // pred_check
      _
    $region15: #{tpu_custom_call.1} parent=1 // pred_check_branch
      %43 = sbr.rel (0) target = $region17
    $region16: #{tpu_custom_call.1} parent=1 // pred_region
      %s45 = ssub.s32 512, 512
      %46 = vsyncadd [#allocation6], %s45
      %s47 = sshll.u32 [#allocation7], 4
      %s48 = int_to_ptr.vmem [resolvable:$true] %s47
      %53 = dma.hbm_to_vmem [thread:$0]  %s3, 512, %s48, [#allocation6], 128, 128, 8
    $region17: #{tpu_custom_call.1} parent=1 // pred_fallthru
      _
    // Predicated region
    $region18: #{tpu_custom_call.1} parent=1 // pred_check
      _
    $region19: #{tpu_custom_call.1} parent=1 // pred_check_branch
      %55 = sbr.rel (0) target = $region21
    $region20: #{tpu_custom_call.1} parent=1 // pred_region
      _
    $region21: #{tpu_custom_call.1} parent=1 // pred_fallthru
      _
    // Predicated region
    $region22: #{tpu_custom_call.1} parent=1 // pred_check
      _
    $region23: #{tpu_custom_call.1} parent=1 // pred_check_branch
      %57 = sbr.rel (0) target = $region25
    $region24: #{tpu_custom_call.1} parent=1 // pred_region
      %58 = dma.done [#allocation3], 4096
    $region25: #{tpu_custom_call.1} parent=1 // pred_fallthru
      _
    // Predicated region
    $region26: #{tpu_custom_call.1} parent=1 // pred_check
      _
    $region27: #{tpu_custom_call.1} parent=1 // pred_check_branch
      %60 = sbr.rel (0) target = $region29
    $region28: #{tpu_custom_call.1} parent=1 // pred_region
      %61 = dma.done [#allocation6], 512
    $region29: #{tpu_custom_call.1} parent=1 // pred_fallthru
      _
    // Predicated region
    $region30: #{tpu_custom_call.1} parent=1 // pred_check
      _
    $region31: #{tpu_custom_call.1} parent=1 // pred_check_branch
      %63 = sbr.rel (0) target = $region33
    $region32: #{tpu_custom_call.1} parent=1 // pred_region
      %64 = dma.done [#allocation6], 512
    $region33: #{tpu_custom_call.1} parent=1 // pred_fallthru
      _
    %v65 = vld [vmem:[#allocation2] sm:$0xff]
    %v66 = vld [vmem:[#allocation2 + $0x8] sm:$0xff]
    %v67 = vld [vmem:[#allocation2 + $0x10] sm:$0xff]
    %v68 = vld [vmem:[#allocation2 + $0x18] sm:$0xff]
    %v69 = vld [vmem:[#allocation2 + $0x20] sm:$0xff]
    %v70 = vld [vmem:[#allocation2 + $0x28] sm:$0xff]
    %v71 = vld [vmem:[#allocation2 + $0x30] sm:$0xff]
    %v72 = vld [vmem:[#allocation2 + $0x38] sm:$0xff]
    %v73 = vld [vmem:[#allocation2 + $0x40] sm:$0xff]
    %v74 = vld [vmem:[#allocation2 + $0x48] sm:$0xff]
    %v75 = vld [vmem:[#allocation2 + $0x50] sm:$0xff]
    %v76 = vld [vmem:[#allocation2 + $0x58] sm:$0xff]
    %v77 = vld [vmem:[#allocation2 + $0x60] sm:$0xff]
    %v78 = vld [vmem:[#allocation2 + $0x68] sm:$0xff]
    %v79 = vld [vmem:[#allocation2 + $0x70] sm:$0xff]
    %v80 = vld [vmem:[#allocation2 + $0x78] sm:$0xff]
    %v81 = vld [vmem:[#allocation2 + $0x80] sm:$0xff]
    %v82 = vld [vmem:[#allocation2 + $0x88] sm:$0xff]
    %v83 = vld [vmem:[#allocation2 + $0x90] sm:$0xff]
    %v84 = vld [vmem:[#allocation2 + $0x98] sm:$0xff]
    %v85 = vld [vmem:[#allocation2 + $0xa0] sm:$0xff]
    %v86 = vld [vmem:[#allocation2 + $0xa8] sm:$0xff]
    %v87 = vld [vmem:[#allocation2 + $0xb0] sm:$0xff]
    %v88 = vld [vmem:[#allocation2 + $0xb8] sm:$0xff]
    %v89 = vld [vmem:[#allocation2 + $0xc0] sm:$0xff]
    %v90 = vld [vmem:[#allocation2 + $0xc8] sm:$0xff]
    %v91 = vld [vmem:[#allocation2 + $0xd0] sm:$0xff]
    %v92 = vld [vmem:[#allocation2 + $0xd8] sm:$0xff]
    %v93 = vld [vmem:[#allocation2 + $0xe0] sm:$0xff]
    %v94 = vld [vmem:[#allocation2 + $0xe8] sm:$0xff]
    %v95 = vld [vmem:[#allocation2 + $0xf0] sm:$0xff]
    %v96 = vld [vmem:[#allocation2 + $0xf8] sm:$0xff]
    %v97 = vld [vmem:[#allocation5] sm:$0xff]
    %v98 = vld [vmem:[#allocation5 + $0x8] sm:$0xff]
    %v99 = vld [vmem:[#allocation5 + $0x10] sm:$0xff]
    %v100 = vld [vmem:[#allocation5 + $0x18] sm:$0xff]
    %v101 = vld [vmem:[%s2] sm:$0x1]
    %v102 = vld [vmem:[#allocation7] sm:$0xff]
    %v103 = vld [vmem:[#allocation7 + $0x8] sm:$0xff]
    %v104 = vld [vmem:[#allocation7 + $0x10] sm:$0xff]
    %v105 = vld [vmem:[#allocation7 + $0x18] sm:$0xff]
    %v106 = vld [vmem:[%s4] sm:$0x1]
    %vm107 = vcmask 261120
    %v108 = vsel %vm107, %v65, 0.0
    %v109 = vsel %vm107, %v66, 0.0
    %v110 = vadd.f32 %v108, %v109
    %v111 = vrot.slane %v110, 4
    %v112 = vadd.f32 %v110, %v111
    %v113 = vrot.slane %v112, 2
    %v114 = vadd.f32 %v112, %v113
    %v115 = vrot.slane %v114, 1
    %v116 = vadd.f32 %v114, %v115
    %v117 = vsel %vm107, %v67, 0.0
    %v118 = vsel %vm107, %v68, 0.0
    %v119 = vadd.f32 %v117, %v118
    %v120 = vrot.slane %v119, 4
    %v121 = vadd.f32 %v119, %v120
    %v122 = vrot.slane %v121, 2
    %v123 = vadd.f32 %v121, %v122
    %v124 = vrot.slane %v123, 1
    %v125 = vadd.f32 %v123, %v124
    %v126 = vsel %vm107, %v69, 0.0
    %v127 = vsel %vm107, %v70, 0.0
    %v128 = vadd.f32 %v126, %v127
    %v129 = vrot.slane %v128, 4
    %v130 = vadd.f32 %v128, %v129
    %v131 = vrot.slane %v130, 2
    %v132 = vadd.f32 %v130, %v131
    %v133 = vrot.slane %v132, 1
    %v134 = vadd.f32 %v132, %v133
    %v135 = vsel %vm107, %v71, 0.0
    %v136 = vsel %vm107, %v72, 0.0
    %v137 = vadd.f32 %v135, %v136
    %v138 = vrot.slane %v137, 4
    %v139 = vadd.f32 %v137, %v138
    %v140 = vrot.slane %v139, 2
    %v141 = vadd.f32 %v139, %v140
    %v142 = vrot.slane %v141, 1
    %v143 = vadd.f32 %v141, %v142
    %v144 = vsel %vm107, %v73, 0.0
    %v145 = vsel %vm107, %v74, 0.0
    %v146 = vadd.f32 %v144, %v145
    %v147 = vrot.slane %v146, 4
    %v148 = vadd.f32 %v146, %v147
    %v149 = vrot.slane %v148, 2
    %v150 = vadd.f32 %v148, %v149
    %v151 = vrot.slane %v150, 1
    %v152 = vadd.f32 %v150, %v151
    %v153 = vsel %vm107, %v75, 0.0
    %v154 = vsel %vm107, %v76, 0.0
    %v155 = vadd.f32 %v153, %v154
    %v156 = vrot.slane %v155, 4
    %v157 = vadd.f32 %v155, %v156
    %v158 = vrot.slane %v157, 2
    %v159 = vadd.f32 %v157, %v158
    %v160 = vrot.slane %v159, 1
    %v161 = vadd.f32 %v159, %v160
    %v162 = vsel %vm107, %v77, 0.0
    %v163 = vsel %vm107, %v78, 0.0
    %v164 = vadd.f32 %v162, %v163
    %v165 = vrot.slane %v164, 4
    %v166 = vadd.f32 %v164, %v165
    %v167 = vrot.slane %v166, 2
    %v168 = vadd.f32 %v166, %v167
    %v169 = vrot.slane %v168, 1
    %v170 = vadd.f32 %v168, %v169
    %v171 = vsel %vm107, %v79, 0.0
    %v172 = vsel %vm107, %v80, 0.0
    %v173 = vadd.f32 %v171, %v172
    %v174 = vrot.slane %v173, 4
    %v175 = vadd.f32 %v173, %v174
    %v176 = vrot.slane %v175, 2
    %v177 = vadd.f32 %v175, %v176
    %v178 = vrot.slane %v177, 1
    %v179 = vadd.f32 %v177, %v178
    %v180 = vsel %vm107, %v81, 0.0
    %v181 = vsel %vm107, %v82, 0.0
    %v182 = vadd.f32 %v180, %v181
    %v183 = vrot.slane %v182, 4
    %v184 = vadd.f32 %v182, %v183
    %v185 = vrot.slane %v184, 2
    %v186 = vadd.f32 %v184, %v185
    %v187 = vrot.slane %v186, 1
    %v188 = vadd.f32 %v186, %v187
    %v189 = vsel %vm107, %v83, 0.0
    %v190 = vsel %vm107, %v84, 0.0
    %v191 = vadd.f32 %v189, %v190
    %v192 = vrot.slane %v191, 4
    %v193 = vadd.f32 %v191, %v192
    %v194 = vrot.slane %v193, 2
    %v195 = vadd.f32 %v193, %v194
    %v196 = vrot.slane %v195, 1
    %v197 = vadd.f32 %v195, %v196
    %v198 = vsel %vm107, %v85, 0.0
    %v199 = vsel %vm107, %v86, 0.0
    %v200 = vadd.f32 %v198, %v199
    %v201 = vrot.slane %v200, 4
    %v202 = vadd.f32 %v200, %v201
    %v203 = vrot.slane %v202, 2
    %v204 = vadd.f32 %v202, %v203
    %v205 = vrot.slane %v204, 1
    %v206 = vadd.f32 %v204, %v205
    %v207 = vsel %vm107, %v87, 0.0
    %v208 = vsel %vm107, %v88, 0.0
    %v209 = vadd.f32 %v207, %v208
    %v210 = vrot.slane %v209, 4
    %v211 = vadd.f32 %v209, %v210
    %v212 = vrot.slane %v211, 2
    %v213 = vadd.f32 %v211, %v212
    %v214 = vrot.slane %v213, 1
    %v215 = vadd.f32 %v213, %v214
    %v216 = vsel %vm107, %v89, 0.0
    %v217 = vsel %vm107, %v90, 0.0
    %v218 = vadd.f32 %v216, %v217
    %v219 = vrot.slane %v218, 4
    %v220 = vadd.f32 %v218, %v219
    %v221 = vrot.slane %v220, 2
    %v222 = vadd.f32 %v220, %v221
    %v223 = vrot.slane %v222, 1
    %v224 = vadd.f32 %v222, %v223
    %v225 = vsel %vm107, %v91, 0.0
    %v226 = vsel %vm107, %v92, 0.0
    %v227 = vadd.f32 %v225, %v226
    %v228 = vrot.slane %v227, 4
    %v229 = vadd.f32 %v227, %v228
    %v230 = vrot.slane %v229, 2
    %v231 = vadd.f32 %v229, %v230
    %v232 = vrot.slane %v231, 1
    %v233 = vadd.f32 %v231, %v232
    %v234 = vsel %vm107, %v93, 0.0
    %v235 = vsel %vm107, %v94, 0.0
    %v236 = vadd.f32 %v234, %v235
    %v237 = vrot.slane %v236, 4
    %v238 = vadd.f32 %v236, %v237
    %v239 = vrot.slane %v238, 2
    %v240 = vadd.f32 %v238, %v239
    %v241 = vrot.slane %v240, 1
    %v242 = vadd.f32 %v240, %v241
    %v243 = vsel %vm107, %v95, 0.0
    %v244 = vsel %vm107, %v96, 0.0
    %v245 = vadd.f32 %v243, %v244
    %v246 = vrot.slane %v245, 4
    %v247 = vadd.f32 %v245, %v246
    %v248 = vrot.slane %v247, 2
    %v249 = vadd.f32 %v247, %v248
    %v250 = vrot.slane %v249, 1
    %v251 = vadd.f32 %v249, %v250
    %v252 = vmul.f32 %v116, 0.0625
    %v253 = vmul.f32 %v125, 0.0625
    %v254 = vmul.f32 %v134, 0.0625
    %v255 = vmul.f32 %v143, 0.0625
    %v256 = vmul.f32 %v152, 0.0625
    %v257 = vmul.f32 %v161, 0.0625
    %v258 = vmul.f32 %v170, 0.0625
    %v259 = vmul.f32 %v179, 0.0625
    %v260 = vmul.f32 %v188, 0.0625
    %v261 = vmul.f32 %v197, 0.0625
    %v262 = vmul.f32 %v206, 0.0625
    %v263 = vmul.f32 %v215, 0.0625
    %v264 = vmul.f32 %v224, 0.0625
    %v265 = vmul.f32 %v233, 0.0625
    %v266 = vmul.f32 %v242, 0.0625
    %v267 = vmul.f32 %v251, 0.0625
    %v269 = vlaneseq
    %v270 = vshrl.u32 %v269, 7
    %v271 = vsub.s32 0, %v270
    %v272 = vrot.slane %v101, %v271
    %vm290 = vcmask 1041409
    %v291 = vsel %vm290, %v253, %v252
    %vm292 = vcmask 1042434
    %v293 = vsel %vm292, %v254, %v291
    %vm294 = vcmask 1043459
    %v295 = vsel %vm294, %v255, %v293
    %vm296 = vcmask 1044484
    %v297 = vsel %vm296, %v256, %v295
    %vm298 = vcmask 1045509
    %v299 = vsel %vm298, %v257, %v297
    %vm300 = vcmask 1046534
    %v301 = vsel %vm300, %v258, %v299
    %vm302 = vcmask 1047559
    %v303 = vsel %vm302, %v259, %v301
    %v304 = vsel %vm290, %v261, %v260
    %v305 = vsel %vm292, %v262, %v304
    %v306 = vsel %vm294, %v263, %v305
    %v307 = vsel %vm296, %v264, %v306
    %v308 = vsel %vm298, %v265, %v307
    %v309 = vsel %vm300, %v266, %v308
    %v310 = vsel %vm302, %v267, %v309
    %v311 = vsel %vm107, %v303, 0
    %v313 = vsel %vm107, %v310, 0
    %315 = vmatprep.subr.mxu0 0.0
    %316 = vmatpush1.msra.mxu0 0.0
    %317 = vmatprep.subr.mxu0 0.0
    %318 = vmatpush1.msra.mxu0 0.0
    %319 = vmatprep.subr.mxu0 0.0
    %320 = vmatpush1.msra.mxu0 0.0
    %321 = vmatprep.subr.mxu0 0.0
    %322 = vmatpush1.msra.mxu0 0.0
    %323 = vmatprep.subr.mxu0 0.0
    %324 = vmatpush1.msra.mxu0 0.0
    %325 = vmatprep.subr.mxu0 0.0
    %326 = vmatpush1.msra.mxu0 0.0
    %327 = vmatprep.subr.mxu0 0.0
    %328 = vmatpush1.msra.mxu0 0.0
    %329 = vmatprep.subr.mxu0 0.0
    %330 = vmatpush1.msra.mxu0 0.0
    %331 = vmatprep.subr.mxu0 0.0
    %332 = vmatpush1.msra.mxu0 0.0
    %333 = vmatprep.subr.mxu0 0.0
    %334 = vmatpush1.msra.mxu0 0.0
    %335 = vmatprep.subr.mxu0 0.0
    %336 = vmatpush1.msra.mxu0 0.0
    %337 = vmatprep.subr.mxu0 0.0
    %338 = vmatpush1.msra.mxu0 0.0
    %339 = vmatprep.subr.mxu0 0.0
    %340 = vmatpush1.msra.mxu0 %v100
    %341 = vmatprep.subr.mxu0 0.0
    %342 = vmatpush1.msra.mxu0 %v99
    %343 = vmatprep.subr.mxu0 0.0
    %344 = vmatpush1.msra.mxu0 %v98
    %345 = vmatprep.subr.mxu0 0.0
    %346 = vmatpush1.msra.mxu0 %v97
    %347 = vmatprep.subr.mxu0 0.0
    %348 = vmatpush2.msra.mxu0 0.0
    %349 = vmatprep.subr.mxu0 0.0
    %350 = vmatpush2.msra.mxu0 0.0
    %351 = vmatprep.subr.mxu0 0.0
    %352 = vmatpush2.msra.mxu0 0.0
    %353 = vmatprep.subr.mxu0 0.0
    %354 = vmatpush2.msra.mxu0 0.0
    %355 = vmatprep.subr.mxu0 0.0
    %356 = vmatpush2.msra.mxu0 0.0
    %357 = vmatprep.subr.mxu0 0.0
    %358 = vmatpush2.msra.mxu0 0.0
    %359 = vmatprep.subr.mxu0 0.0
    %360 = vmatpush2.msra.mxu0 0.0
    %361 = vmatprep.subr.mxu0 0.0
    %362 = vmatpush2.msra.mxu0 0.0
    %363 = vmatprep.subr.mxu0 0.0
    %364 = vmatpush2.msra.mxu0 0.0
    %365 = vmatprep.subr.mxu0 0.0
    %366 = vmatpush2.msra.mxu0 0.0
    %367 = vmatprep.subr.mxu0 0.0
    %368 = vmatpush2.msra.mxu0 0.0
    %369 = vmatprep.subr.mxu0 0.0
    %370 = vmatpush2.msra.mxu0 0.0
    %371 = vmatprep.subr.mxu0 0.0
    %372 = vmatpush2.msra.mxu0 0.0
    %373 = vmatprep.subr.mxu0 0.0
    %374 = vmatpush2.msra.mxu0 0.0
    %375 = vmatprep.subr.mxu0 0.0
    %376 = vmatpush2.msra.mxu0 0.0
    %377 = vmatprep.subr.mxu0 0.0
    %378 = vmatpush2.msra.mxu0 0.0
    %379 = vmatprep.mubr.f32.mxu0 0.0
    %380 = vmatmul.mubr.f32.gmra.mxu0 %v311
    %v381 = vpop.f32.mrf.mxu0
    %v382 = vadd.f32 %v272, %v381
    %v383 = vpop.f32.mrf.mxu0
    %384 = vmatprep.mubr.f32.mxu0 0.0
    %385 = vmatmul.mubr.f32.gmra.mxu0 %v313
    %v386 = vpop.f32.mrf.mxu0
    %v387 = vadd.f32 %v272, %v386
    %v388 = vpop.f32.mrf.mxu0
    %389 = vdwg.mxu0
    %v391 = vsel %vm107, %v382, 0
    %v394 = vsel %vm107, %v387, 0
    %v397 = vsel %vm107, %v102, 0
    %v400 = vsel %vm107, %v103, 0
    %v403 = vsel %vm107, %v104, 0
    %v406 = vsel %vm107, %v105, 0
    %408 = vmatprep.subr.mxu0 0.0
    %409 = vmatpush1.xpose.msra.mxu0 0.0
    %410 = vmatprep.subr.mxu0 0.0
    %411 = vmatpush1.xpose.msra.mxu0 0.0
    %412 = vmatprep.subr.mxu0 0.0
    %413 = vmatpush1.xpose.msra.mxu0 0.0
    %414 = vmatprep.subr.mxu0 0.0
    %415 = vmatpush1.xpose.msra.mxu0 0.0
    %416 = vmatprep.subr.mxu0 0.0
    %417 = vmatpush1.xpose.msra.mxu0 0.0
    %418 = vmatprep.subr.mxu0 0.0
    %419 = vmatpush1.xpose.msra.mxu0 0.0
    %420 = vmatprep.subr.mxu0 0.0
    %421 = vmatpush1.xpose.msra.mxu0 0.0
    %422 = vmatprep.subr.mxu0 0.0
    %423 = vmatpush1.xpose.msra.mxu0 0.0
    %424 = vmatprep.subr.mxu0 0.0
    %425 = vmatpush1.xpose.msra.mxu0 0.0
    %426 = vmatprep.subr.mxu0 0.0
    %427 = vmatpush1.xpose.msra.mxu0 0.0
    %428 = vmatprep.subr.mxu0 0.0
    %429 = vmatpush1.xpose.msra.mxu0 0.0
    %430 = vmatprep.subr.mxu0 0.0
    %431 = vmatpush1.xpose.msra.mxu0 0.0
    %432 = vmatprep.subr.mxu0 0.0
    %433 = vmatpush1.xpose.msra.mxu0 %v406
    %434 = vmatprep.subr.mxu0 0.0
    %435 = vmatpush1.xpose.msra.mxu0 %v403
    %436 = vmatprep.subr.mxu0 0.0
    %437 = vmatpush1.xpose.msra.mxu0 %v400
    %438 = vmatprep.subr.mxu0 0.0
    %439 = vmatpush1.xpose.msra.mxu0 %v397
    %440 = vmatprep.subr.mxu0 0.0
    %441 = vmatpush2.xpose.msra.mxu0 0.0
    %442 = vmatprep.subr.mxu0 0.0
    %443 = vmatpush2.xpose.msra.mxu0 0.0
    %444 = vmatprep.subr.mxu0 0.0
    %445 = vmatpush2.xpose.msra.mxu0 0.0
    %446 = vmatprep.subr.mxu0 0.0
    %447 = vmatpush2.xpose.msra.mxu0 0.0
    %448 = vmatprep.subr.mxu0 0.0
    %449 = vmatpush2.xpose.msra.mxu0 0.0
    %450 = vmatprep.subr.mxu0 0.0
    %451 = vmatpush2.xpose.msra.mxu0 0.0
    %452 = vmatprep.subr.mxu0 0.0
    %453 = vmatpush2.xpose.msra.mxu0 0.0
    %454 = vmatprep.subr.mxu0 0.0
    %455 = vmatpush2.xpose.msra.mxu0 0.0
    %456 = vmatprep.subr.mxu0 0.0
    %457 = vmatpush2.xpose.msra.mxu0 0.0
    %458 = vmatprep.subr.mxu0 0.0
    %459 = vmatpush2.xpose.msra.mxu0 0.0
    %460 = vmatprep.subr.mxu0 0.0
    %461 = vmatpush2.xpose.msra.mxu0 0.0
    %462 = vmatprep.subr.mxu0 0.0
    %463 = vmatpush2.xpose.msra.mxu0 0.0
    %464 = vmatprep.subr.mxu0 0.0
    %465 = vmatpush2.xpose.msra.mxu0 0.0
    %466 = vmatprep.subr.mxu0 0.0
    %467 = vmatpush2.xpose.msra.mxu0 0.0
    %468 = vmatprep.subr.mxu0 0.0
    %469 = vmatpush2.xpose.msra.mxu0 0.0
    %470 = vmatprep.subr.mxu0 0.0
    %471 = vmatpush2.xpose.msra.mxu0 0.0
    %472 = vmatprep.mubr.f32.mxu0 0.0
    %473 = vmatmul.mubr.f32.gmra.mxu0 %v391
    %v474 = vpop.f32.mrf.mxu0
    %v475 = vadd.f32 0.0, %v474
    %v476 = vpop.f32.mrf.mxu0
    %477 = vmatprep.mubr.f32.mxu0 0.0
    %478 = vmatmul.mubr.f32.gmra.mxu0 %v394
    %v479 = vpop.f32.mrf.mxu0
    %v480 = vadd.f32 0.0, %v479
    %v481 = vpop.f32.mrf.mxu0
    %482 = vdwg.mxu0
    %v484 = vlaneseq
    %v485 = vshrl.u32 %v484, 7
    %v486 = vsub.s32 0, %v485
    %v487 = vrot.slane %v106, %v486
    %v489 = vmul.f32 %v382, %v487
    %v490 = vmul.f32 %v387, %v487
    %v491 = vsel %vm107, %v489, 0.0
    %492 = vadd.xlane.f32.xlu0 %v491
    %v493 = vpop.xlane.xlu0 %492
    %v494 = vsel %vm107, %v490, 0.0
    %495 = vadd.xlane.f32.xlu0 %v494
    %v496 = vpop.xlane.xlu0 %495
    %v499 = vcombine.high %v475, %v475
    %v501 = vunpack.c.l.s4 1966171168
    %v502 = vunpack.c.0.s8 %v501
    %v503 = vlaneseq
    %v504 = vshrl.u32 %v503, 7
    %v505 = vsub.s32 %v502, %v504
    %v506 = vrot.slane %v475, %v505
    %v508 = vunpack.c.l.s4 1966171168
    %v509 = vunpack.c.0.s8 %v508
    %v510 = vlaneseq
    %v511 = vshrl.u32 %v510, 7
    %v512 = vsub.s32 %v509, %v511
    %v513 = vrot.slane %v499, %v512
    %v514 = vcombine.high %v506, %v506
    %v515 = vcombine.high %v513, %v513
    %v517 = vunpack.c.l.s4 1966171168
    %v518 = vunpack.c.0.s8 %v517
    %v519 = vlaneseq
    %v520 = vshrl.u32 %v519, 7
    %v521 = vsub.s32 %v518, %v520
    %v522 = vrot.slane %v506, %v521
    %v524 = vunpack.c.l.s4 1966171168
    %v525 = vunpack.c.0.s8 %v524
    %v526 = vlaneseq
    %v527 = vshrl.u32 %v526, 7
    %v528 = vsub.s32 %v525, %v527
    %v529 = vrot.slane %v513, %v528
    %v531 = vunpack.c.l.s4 1966171168
    %v532 = vunpack.c.0.s8 %v531
    %v533 = vlaneseq
    %v534 = vshrl.u32 %v533, 7
    %v535 = vsub.s32 %v532, %v534
    %v536 = vrot.slane %v514, %v535
    %v538 = vunpack.c.l.s4 1966171168
    %v539 = vunpack.c.0.s8 %v538
    %v540 = vlaneseq
    %v541 = vshrl.u32 %v540, 7
    %v542 = vsub.s32 %v539, %v541
    %v543 = vrot.slane %v515, %v542
    %v544 = vcombine.high %v522, %v522
    %v545 = vcombine.high %v529, %v529
    %v546 = vcombine.high %v536, %v536
    %v547 = vcombine.high %v543, %v543
    %v548 = vcombine.high %v480, %v480
    %v550 = vunpack.c.l.s4 1966171168
    %v551 = vunpack.c.0.s8 %v550
    %v552 = vlaneseq
    %v553 = vshrl.u32 %v552, 7
    %v554 = vsub.s32 %v551, %v553
    %v555 = vrot.slane %v480, %v554
    %v557 = vunpack.c.l.s4 1966171168
    %v558 = vunpack.c.0.s8 %v557
    %v559 = vlaneseq
    %v560 = vshrl.u32 %v559, 7
    %v561 = vsub.s32 %v558, %v560
    %v562 = vrot.slane %v548, %v561
    %v563 = vcombine.high %v555, %v555
    %v564 = vcombine.high %v562, %v562
    %v566 = vunpack.c.l.s4 1966171168
    %v567 = vunpack.c.0.s8 %v566
    %v568 = vlaneseq
    %v569 = vshrl.u32 %v568, 7
    %v570 = vsub.s32 %v567, %v569
    %v571 = vrot.slane %v555, %v570
    %v573 = vunpack.c.l.s4 1966171168
    %v574 = vunpack.c.0.s8 %v573
    %v575 = vlaneseq
    %v576 = vshrl.u32 %v575, 7
    %v577 = vsub.s32 %v574, %v576
    %v578 = vrot.slane %v562, %v577
    %v580 = vunpack.c.l.s4 1966171168
    %v581 = vunpack.c.0.s8 %v580
    %v582 = vlaneseq
    %v583 = vshrl.u32 %v582, 7
    %v584 = vsub.s32 %v581, %v583
    %v585 = vrot.slane %v563, %v584
    %v587 = vunpack.c.l.s4 1966171168
    %v588 = vunpack.c.0.s8 %v587
    %v589 = vlaneseq
    %v590 = vshrl.u32 %v589, 7
    %v591 = vsub.s32 %v588, %v590
    %v592 = vrot.slane %v564, %v591
    %v593 = vcombine.high %v571, %v571
    %v594 = vcombine.high %v578, %v578
    %v595 = vcombine.high %v585, %v585
    %v596 = vcombine.high %v592, %v592
    %v597 = vlaneseq
    %v598 = vshrl.u32 %v597, 7
    %v599 = vsub.s32 0, %v598
    %v600 = vrot.slane %v522, %v599
    %v601 = vlaneseq
    %v602 = vshrl.u32 %v601, 7
    %v603 = vsub.s32 0, %v602
    %v604 = vrot.slane %v536, %v603
    %v605 = vlaneseq
    %v606 = vshrl.u32 %v605, 7
    %v607 = vsub.s32 0, %v606
    %v608 = vrot.slane %v544, %v607
    %v609 = vlaneseq
    %v610 = vshrl.u32 %v609, 7
    %v611 = vsub.s32 0, %v610
    %v612 = vrot.slane %v546, %v611
    %v613 = vlaneseq
    %v614 = vshrl.u32 %v613, 7
    %v615 = vsub.s32 0, %v614
    %v616 = vrot.slane %v529, %v615
    %v617 = vlaneseq
    %v618 = vshrl.u32 %v617, 7
    %v619 = vsub.s32 0, %v618
    %v620 = vrot.slane %v543, %v619
    %v621 = vlaneseq
    %v622 = vshrl.u32 %v621, 7
    %v623 = vsub.s32 0, %v622
    %v624 = vrot.slane %v545, %v623
    %v625 = vlaneseq
    %v626 = vshrl.u32 %v625, 7
    %v627 = vsub.s32 0, %v626
    %v628 = vrot.slane %v547, %v627
    %v629 = vlaneseq
    %v630 = vshrl.u32 %v629, 7
    %v631 = vsub.s32 0, %v630
    %v632 = vrot.slane %v571, %v631
    %v633 = vlaneseq
    %v634 = vshrl.u32 %v633, 7
    %v635 = vsub.s32 0, %v634
    %v636 = vrot.slane %v585, %v635
    %v637 = vlaneseq
    %v638 = vshrl.u32 %v637, 7
    %v639 = vsub.s32 0, %v638
    %v640 = vrot.slane %v593, %v639
    %v641 = vlaneseq
    %v642 = vshrl.u32 %v641, 7
    %v643 = vsub.s32 0, %v642
    %v644 = vrot.slane %v595, %v643
    %v645 = vlaneseq
    %v646 = vshrl.u32 %v645, 7
    %v647 = vsub.s32 0, %v646
    %v648 = vrot.slane %v578, %v647
    %v649 = vlaneseq
    %v650 = vshrl.u32 %v649, 7
    %v651 = vsub.s32 0, %v650
    %v652 = vrot.slane %v592, %v651
    %v653 = vlaneseq
    %v654 = vshrl.u32 %v653, 7
    %v655 = vsub.s32 0, %v654
    %v656 = vrot.slane %v594, %v655
    %v657 = vlaneseq
    %v658 = vshrl.u32 %v657, 7
    %v659 = vsub.s32 0, %v658
    %v660 = vrot.slane %v596, %v659
    %v677 = vmul.f32 %v65, %v600
    %v678 = vmul.f32 %v66, %v600
    %v679 = vmul.f32 %v67, %v604
    %v680 = vmul.f32 %v68, %v604
    %v681 = vmul.f32 %v69, %v608
    %v682 = vmul.f32 %v70, %v608
    %v683 = vmul.f32 %v71, %v612
    %v684 = vmul.f32 %v72, %v612
    %v685 = vmul.f32 %v73, %v616
    %v686 = vmul.f32 %v74, %v616
    %v687 = vmul.f32 %v75, %v620
    %v688 = vmul.f32 %v76, %v620
    %v689 = vmul.f32 %v77, %v624
    %v690 = vmul.f32 %v78, %v624
    %v691 = vmul.f32 %v79, %v628
    %v692 = vmul.f32 %v80, %v628
    %v693 = vmul.f32 %v81, %v632
    %v694 = vmul.f32 %v82, %v632
    %v695 = vmul.f32 %v83, %v636
    %v696 = vmul.f32 %v84, %v636
    %v697 = vmul.f32 %v85, %v640
    %v698 = vmul.f32 %v86, %v640
    %v699 = vmul.f32 %v87, %v644
    %v700 = vmul.f32 %v88, %v644
    %v701 = vmul.f32 %v89, %v648
    %v702 = vmul.f32 %v90, %v648
    %v703 = vmul.f32 %v91, %v652
    %v704 = vmul.f32 %v92, %v652
    %v705 = vmul.f32 %v93, %v656
    %v706 = vmul.f32 %v94, %v656
    %v707 = vmul.f32 %v95, %v660
    %v708 = vmul.f32 %v96, %v660
    %v709 = vsel %vm107, %v677, 0.0
    %710 = vadd.xlane.f32.xlu0 %v709
    %v711 = vpop.xlane.xlu0 %710
    %v712 = vsel %vm107, %v678, 0.0
    %713 = vadd.xlane.f32.xlu0 %v712
    %v714 = vpop.xlane.xlu0 %713
    %v715 = vsel %vm107, %v679, 0.0
    %716 = vadd.xlane.f32.xlu0 %v715
    %v717 = vpop.xlane.xlu0 %716
    %v718 = vsel %vm107, %v680, 0.0
    %719 = vadd.xlane.f32.xlu0 %v718
    %v720 = vpop.xlane.xlu0 %719
    %v721 = vsel %vm107, %v681, 0.0
    %722 = vadd.xlane.f32.xlu0 %v721
    %v723 = vpop.xlane.xlu0 %722
    %v724 = vsel %vm107, %v682, 0.0
    %725 = vadd.xlane.f32.xlu0 %v724
    %v726 = vpop.xlane.xlu0 %725
    %v727 = vsel %vm107, %v683, 0.0
    %728 = vadd.xlane.f32.xlu0 %v727
    %v729 = vpop.xlane.xlu0 %728
    %v730 = vsel %vm107, %v684, 0.0
    %731 = vadd.xlane.f32.xlu0 %v730
    %v732 = vpop.xlane.xlu0 %731
    %v733 = vsel %vm107, %v685, 0.0
    %734 = vadd.xlane.f32.xlu0 %v733
    %v735 = vpop.xlane.xlu0 %734
    %v736 = vsel %vm107, %v686, 0.0
    %737 = vadd.xlane.f32.xlu0 %v736
    %v738 = vpop.xlane.xlu0 %737
    %v739 = vsel %vm107, %v687, 0.0
    %740 = vadd.xlane.f32.xlu0 %v739
    %v741 = vpop.xlane.xlu0 %740
    %v742 = vsel %vm107, %v688, 0.0
    %743 = vadd.xlane.f32.xlu0 %v742
    %v744 = vpop.xlane.xlu0 %743
    %v745 = vsel %vm107, %v689, 0.0
    %746 = vadd.xlane.f32.xlu0 %v745
    %v747 = vpop.xlane.xlu0 %746
    %v748 = vsel %vm107, %v690, 0.0
    %749 = vadd.xlane.f32.xlu0 %v748
    %v750 = vpop.xlane.xlu0 %749
    %v751 = vsel %vm107, %v691, 0.0
    %752 = vadd.xlane.f32.xlu0 %v751
    %v753 = vpop.xlane.xlu0 %752
    %v754 = vsel %vm107, %v692, 0.0
    %755 = vadd.xlane.f32.xlu0 %v754
    %v756 = vpop.xlane.xlu0 %755
    %v757 = vsel %vm107, %v693, 0.0
    %758 = vadd.xlane.f32.xlu0 %v757
    %v759 = vpop.xlane.xlu0 %758
    %v760 = vsel %vm107, %v694, 0.0
    %761 = vadd.xlane.f32.xlu0 %v760
    %v762 = vpop.xlane.xlu0 %761
    %v763 = vsel %vm107, %v695, 0.0
    %764 = vadd.xlane.f32.xlu0 %v763
    %v765 = vpop.xlane.xlu0 %764
    %v766 = vsel %vm107, %v696, 0.0
    %767 = vadd.xlane.f32.xlu0 %v766
    %v768 = vpop.xlane.xlu0 %767
    %v769 = vsel %vm107, %v697, 0.0
    %770 = vadd.xlane.f32.xlu0 %v769
    %v771 = vpop.xlane.xlu0 %770
    %v772 = vsel %vm107, %v698, 0.0
    %773 = vadd.xlane.f32.xlu0 %v772
    %v774 = vpop.xlane.xlu0 %773
    %v775 = vsel %vm107, %v699, 0.0
    %776 = vadd.xlane.f32.xlu0 %v775
    %v777 = vpop.xlane.xlu0 %776
    %v778 = vsel %vm107, %v700, 0.0
    %779 = vadd.xlane.f32.xlu0 %v778
    %v780 = vpop.xlane.xlu0 %779
    %v781 = vsel %vm107, %v701, 0.0
    %782 = vadd.xlane.f32.xlu0 %v781
    %v783 = vpop.xlane.xlu0 %782
    %v784 = vsel %vm107, %v702, 0.0
    %785 = vadd.xlane.f32.xlu0 %v784
    %v786 = vpop.xlane.xlu0 %785
    %v787 = vsel %vm107, %v703, 0.0
    %788 = vadd.xlane.f32.xlu0 %v787
    %v789 = vpop.xlane.xlu0 %788
    %v790 = vsel %vm107, %v704, 0.0
    %791 = vadd.xlane.f32.xlu0 %v790
    %v792 = vpop.xlane.xlu0 %791
    %v793 = vsel %vm107, %v705, 0.0
    %794 = vadd.xlane.f32.xlu0 %v793
    %v795 = vpop.xlane.xlu0 %794
    %v796 = vsel %vm107, %v706, 0.0
    %797 = vadd.xlane.f32.xlu0 %v796
    %v798 = vpop.xlane.xlu0 %797
    %v799 = vsel %vm107, %v707, 0.0
    %800 = vadd.xlane.f32.xlu0 %v799
    %v801 = vpop.xlane.xlu0 %800
    %v802 = vsel %vm107, %v708, 0.0
    %803 = vadd.xlane.f32.xlu0 %v802
    %v804 = vpop.xlane.xlu0 %803
    %v807 = vlaneseq
    %v808 = vshrl.u32 %v807, 7
    %v809 = vsub.s32 0, %v808
    %v810 = vrot.slane %v493, %v809
    %v811 = vlaneseq
    %v812 = vshrl.u32 %v811, 7
    %v813 = vsub.s32 1, %v812
    %v814 = vrot.slane %v493, %v813
    %v815 = vlaneseq
    %v816 = vshrl.u32 %v815, 7
    %v817 = vsub.s32 2, %v816
    %v818 = vrot.slane %v493, %v817
    %v819 = vlaneseq
    %v820 = vshrl.u32 %v819, 7
    %v821 = vsub.s32 3, %v820
    %v822 = vrot.slane %v493, %v821
    %v823 = vlaneseq
    %v824 = vshrl.u32 %v823, 7
    %v825 = vsub.s32 4, %v824
    %v826 = vrot.slane %v493, %v825
    %v827 = vlaneseq
    %v828 = vshrl.u32 %v827, 7
    %v829 = vsub.s32 5, %v828
    %v830 = vrot.slane %v493, %v829
    %v831 = vlaneseq
    %v832 = vshrl.u32 %v831, 7
    %v833 = vsub.s32 6, %v832
    %v834 = vrot.slane %v493, %v833
    %v835 = vlaneseq
    %v836 = vshrl.u32 %v835, 7
    %v837 = vsub.s32 7, %v836
    %v838 = vrot.slane %v493, %v837
    %v839 = vlaneseq
    %v840 = vshrl.u32 %v839, 7
    %v841 = vsub.s32 0, %v840
    %v842 = vrot.slane %v496, %v841
    %v843 = vlaneseq
    %v844 = vshrl.u32 %v843, 7
    %v845 = vsub.s32 1, %v844
    %v846 = vrot.slane %v496, %v845
    %v847 = vlaneseq
    %v848 = vshrl.u32 %v847, 7
    %v849 = vsub.s32 2, %v848
    %v850 = vrot.slane %v496, %v849
    %v851 = vlaneseq
    %v852 = vshrl.u32 %v851, 7
    %v853 = vsub.s32 3, %v852
    %v854 = vrot.slane %v496, %v853
    %v855 = vlaneseq
    %v856 = vshrl.u32 %v855, 7
    %v857 = vsub.s32 4, %v856
    %v858 = vrot.slane %v496, %v857
    %v859 = vlaneseq
    %v860 = vshrl.u32 %v859, 7
    %v861 = vsub.s32 5, %v860
    %v862 = vrot.slane %v496, %v861
    %v863 = vlaneseq
    %v864 = vshrl.u32 %v863, 7
    %v865 = vsub.s32 6, %v864
    %v866 = vrot.slane %v496, %v865
    %v867 = vlaneseq
    %v868 = vshrl.u32 %v867, 7
    %v869 = vsub.s32 7, %v868
    %v870 = vrot.slane %v496, %v869
    %v887 = vadd.f32 %v711, %v810
    %v888 = vadd.f32 %v714, %v810
    %v889 = vadd.f32 %v717, %v814
    %v890 = vadd.f32 %v720, %v814
    %v891 = vadd.f32 %v723, %v818
    %v892 = vadd.f32 %v726, %v818
    %v893 = vadd.f32 %v729, %v822
    %v894 = vadd.f32 %v732, %v822
    %v895 = vadd.f32 %v735, %v826
    %v896 = vadd.f32 %v738, %v826
    %v897 = vadd.f32 %v741, %v830
    %v898 = vadd.f32 %v744, %v830
    %v899 = vadd.f32 %v747, %v834
    %v900 = vadd.f32 %v750, %v834
    %v901 = vadd.f32 %v753, %v838
    %v902 = vadd.f32 %v756, %v838
    %v903 = vadd.f32 %v759, %v842
    %v904 = vadd.f32 %v762, %v842
    %v905 = vadd.f32 %v765, %v846
    %v906 = vadd.f32 %v768, %v846
    %v907 = vadd.f32 %v771, %v850
    %v908 = vadd.f32 %v774, %v850
    %v909 = vadd.f32 %v777, %v854
    %v910 = vadd.f32 %v780, %v854
    %v911 = vadd.f32 %v783, %v858
    %v912 = vadd.f32 %v786, %v858
    %v913 = vadd.f32 %v789, %v862
    %v914 = vadd.f32 %v792, %v862
    %v915 = vadd.f32 %v795, %v866
    %v916 = vadd.f32 %v798, %v866
    %v917 = vadd.f32 %v801, %v870
    %v918 = vadd.f32 %v804, %v870
    %v919 = vmul.f32 %v887, 0.17677669
    %v920 = vmul.f32 %v888, 0.17677669
    %v921 = vmul.f32 %v889, 0.17677669
    %v922 = vmul.f32 %v890, 0.17677669
    %v923 = vmul.f32 %v891, 0.17677669
    %v924 = vmul.f32 %v892, 0.17677669
    %v925 = vmul.f32 %v893, 0.17677669
    %v926 = vmul.f32 %v894, 0.17677669
    %v927 = vmul.f32 %v895, 0.17677669
    %v928 = vmul.f32 %v896, 0.17677669
    %v929 = vmul.f32 %v897, 0.17677669
    %v930 = vmul.f32 %v898, 0.17677669
    %v931 = vmul.f32 %v899, 0.17677669
    %v932 = vmul.f32 %v900, 0.17677669
    %v933 = vmul.f32 %v901, 0.17677669
    %v934 = vmul.f32 %v902, 0.17677669
    %v935 = vmul.f32 %v903, 0.17677669
    %v936 = vmul.f32 %v904, 0.17677669
    %v937 = vmul.f32 %v905, 0.17677669
    %v938 = vmul.f32 %v906, 0.17677669
    %v939 = vmul.f32 %v907, 0.17677669
    %v940 = vmul.f32 %v908, 0.17677669
    %v941 = vmul.f32 %v909, 0.17677669
    %v942 = vmul.f32 %v910, 0.17677669
    %v943 = vmul.f32 %v911, 0.17677669
    %v944 = vmul.f32 %v912, 0.17677669
    %v945 = vmul.f32 %v913, 0.17677669
    %v946 = vmul.f32 %v914, 0.17677669
    %v947 = vmul.f32 %v915, 0.17677669
    %v948 = vmul.f32 %v916, 0.17677669
    %v949 = vmul.f32 %v917, 0.17677669
    %v950 = vmul.f32 %v918, 0.17677669
    %v951 = vxor.u32 %v919, 2147483648
    %v952 = vxor.u32 %v920, 2147483648
    %v953 = vxor.u32 %v921, 2147483648
    %v954 = vxor.u32 %v922, 2147483648
    %v955 = vxor.u32 %v923, 2147483648
    %v956 = vxor.u32 %v924, 2147483648
    %v957 = vxor.u32 %v925, 2147483648
    %v958 = vxor.u32 %v926, 2147483648
    %v959 = vxor.u32 %v927, 2147483648
    %v960 = vxor.u32 %v928, 2147483648
    %v961 = vxor.u32 %v929, 2147483648
    %v962 = vxor.u32 %v930, 2147483648
    %v963 = vxor.u32 %v931, 2147483648
    %v964 = vxor.u32 %v932, 2147483648
    %v965 = vxor.u32 %v933, 2147483648
    %v966 = vxor.u32 %v934, 2147483648
    %v967 = vxor.u32 %v935, 2147483648
    %v968 = vxor.u32 %v936, 2147483648
    %v969 = vxor.u32 %v937, 2147483648
    %v970 = vxor.u32 %v938, 2147483648
    %v971 = vxor.u32 %v939, 2147483648
    %v972 = vxor.u32 %v940, 2147483648
    %v973 = vxor.u32 %v941, 2147483648
    %v974 = vxor.u32 %v942, 2147483648
    %v975 = vxor.u32 %v943, 2147483648
    %v976 = vxor.u32 %v944, 2147483648
    %v977 = vxor.u32 %v945, 2147483648
    %v978 = vxor.u32 %v946, 2147483648
    %v979 = vxor.u32 %v947, 2147483648
    %v980 = vxor.u32 %v948, 2147483648
    %v981 = vxor.u32 %v949, 2147483648
    %v982 = vxor.u32 %v950, 2147483648
    %v983 = vmul.f32 %v951, 1.442695
    %v984 = vpow.pop %v983
    %v985 = vmul.f32 %v952, 1.442695
    %v986 = vpow.pop %v985
    %v987 = vmul.f32 %v953, 1.442695
    %v988 = vpow.pop %v987
    %v989 = vmul.f32 %v954, 1.442695
    %v990 = vpow.pop %v989
    %v991 = vmul.f32 %v955, 1.442695
    %v992 = vpow.pop %v991
    %v993 = vmul.f32 %v956, 1.442695
    %v994 = vpow.pop %v993
    %v995 = vmul.f32 %v957, 1.442695
    %v996 = vpow.pop %v995
    %v997 = vmul.f32 %v958, 1.442695
    %v998 = vpow.pop %v997
    %v999 = vmul.f32 %v959, 1.442695
    %v1000 = vpow.pop %v999
    %v1001 = vmul.f32 %v960, 1.442695
    %v1002 = vpow.pop %v1001
    %v1003 = vmul.f32 %v961, 1.442695
    %v1004 = vpow.pop %v1003
    %v1005 = vmul.f32 %v962, 1.442695
    %v1006 = vpow.pop %v1005
    %v1007 = vmul.f32 %v963, 1.442695
    %v1008 = vpow.pop %v1007
    %v1009 = vmul.f32 %v964, 1.442695
    %v1010 = vpow.pop %v1009
    %v1011 = vmul.f32 %v965, 1.442695
    %v1012 = vpow.pop %v1011
    %v1013 = vmul.f32 %v966, 1.442695
    %v1014 = vpow.pop %v1013
    %v1015 = vmul.f32 %v967, 1.442695
    %v1016 = vpow.pop %v1015
    %v1017 = vmul.f32 %v968, 1.442695
    %v1018 = vpow.pop %v1017
    %v1019 = vmul.f32 %v969, 1.442695
    %v1020 = vpow.pop %v1019
    %v1021 = vmul.f32 %v970, 1.442695
    %v1022 = vpow.pop %v1021
    %v1023 = vmul.f32 %v971, 1.442695
    %v1024 = vpow.pop %v1023
    %v1025 = vmul.f32 %v972, 1.442695
    %v1026 = vpow.pop %v1025
    %v1027 = vmul.f32 %v973, 1.442695
    %v1028 = vpow.pop %v1027
    %v1029 = vmul.f32 %v974, 1.442695
    %v1030 = vpow.pop %v1029
    %v1031 = vmul.f32 %v975, 1.442695
    %v1032 = vpow.pop %v1031
    %v1033 = vmul.f32 %v976, 1.442695
    %v1034 = vpow.pop %v1033
    %v1035 = vmul.f32 %v977, 1.442695
    %v1036 = vpow.pop %v1035
    %v1037 = vmul.f32 %v978, 1.442695
    %v1038 = vpow.pop %v1037
    %v1039 = vmul.f32 %v979, 1.442695
    %v1040 = vpow.pop %v1039
    %v1041 = vmul.f32 %v980, 1.442695
    %v1042 = vpow.pop %v1041
    %v1043 = vmul.f32 %v981, 1.442695
    %v1044 = vpow.pop %v1043
    %v1045 = vmul.f32 %v982, 1.442695
    %v1046 = vpow.pop %v1045
    %v1047 = vadd.f32 %v984, 1.0
    %v1048 = vadd.f32 %v986, 1.0
    %v1049 = vadd.f32 %v988, 1.0
    %v1050 = vadd.f32 %v990, 1.0
    %v1051 = vadd.f32 %v992, 1.0
    %v1052 = vadd.f32 %v994, 1.0
    %v1053 = vadd.f32 %v996, 1.0
    %v1054 = vadd.f32 %v998, 1.0
    %v1055 = vadd.f32 %v1000, 1.0
    %v1056 = vadd.f32 %v1002, 1.0
    %v1057 = vadd.f32 %v1004, 1.0
    %v1058 = vadd.f32 %v1006, 1.0
    %v1059 = vadd.f32 %v1008, 1.0
    %v1060 = vadd.f32 %v1010, 1.0
    %v1061 = vadd.f32 %v1012, 1.0
    %v1062 = vadd.f32 %v1014, 1.0
    %v1063 = vadd.f32 %v1016, 1.0
    %v1064 = vadd.f32 %v1018, 1.0
    %v1065 = vadd.f32 %v1020, 1.0
    %v1066 = vadd.f32 %v1022, 1.0
    %v1067 = vadd.f32 %v1024, 1.0
    %v1068 = vadd.f32 %v1026, 1.0
    %v1069 = vadd.f32 %v1028, 1.0
    %v1070 = vadd.f32 %v1030, 1.0
    %v1071 = vadd.f32 %v1032, 1.0
    %v1072 = vadd.f32 %v1034, 1.0
    %v1073 = vadd.f32 %v1036, 1.0
    %v1074 = vadd.f32 %v1038, 1.0
    %v1075 = vadd.f32 %v1040, 1.0
    %v1076 = vadd.f32 %v1042, 1.0
    %v1077 = vadd.f32 %v1044, 1.0
    %v1078 = vadd.f32 %v1046, 1.0
    %v1079 = vrcp.pop %v1047
    %v1080 = vmul.f32 1.0, %v1079
    %v1081 = vrcp.pop %v1048
    %v1082 = vmul.f32 1.0, %v1081
    %v1083 = vrcp.pop %v1049
    %v1084 = vmul.f32 1.0, %v1083
    %v1085 = vrcp.pop %v1050
    %v1086 = vmul.f32 1.0, %v1085
    %v1087 = vrcp.pop %v1051
    %v1088 = vmul.f32 1.0, %v1087
    %v1089 = vrcp.pop %v1052
    %v1090 = vmul.f32 1.0, %v1089
    %v1091 = vrcp.pop %v1053
    %v1092 = vmul.f32 1.0, %v1091
    %v1093 = vrcp.pop %v1054
    %v1094 = vmul.f32 1.0, %v1093
    %v1095 = vrcp.pop %v1055
    %v1096 = vmul.f32 1.0, %v1095
    %v1097 = vrcp.pop %v1056
    %v1098 = vmul.f32 1.0, %v1097
    %v1099 = vrcp.pop %v1057
    %v1100 = vmul.f32 1.0, %v1099
    %v1101 = vrcp.pop %v1058
    %v1102 = vmul.f32 1.0, %v1101
    %v1103 = vrcp.pop %v1059
    %v1104 = vmul.f32 1.0, %v1103
    %v1105 = vrcp.pop %v1060
    %v1106 = vmul.f32 1.0, %v1105
    %v1107 = vrcp.pop %v1061
    %v1108 = vmul.f32 1.0, %v1107
    %v1109 = vrcp.pop %v1062
    %v1110 = vmul.f32 1.0, %v1109
    %v1111 = vrcp.pop %v1063
    %v1112 = vmul.f32 1.0, %v1111
    %v1113 = vrcp.pop %v1064
    %v1114 = vmul.f32 1.0, %v1113
    %v1115 = vrcp.pop %v1065
    %v1116 = vmul.f32 1.0, %v1115
    %v1117 = vrcp.pop %v1066
    %v1118 = vmul.f32 1.0, %v1117
    %v1119 = vrcp.pop %v1067
    %v1120 = vmul.f32 1.0, %v1119
    %v1121 = vrcp.pop %v1068
    %v1122 = vmul.f32 1.0, %v1121
    %v1123 = vrcp.pop %v1069
    %v1124 = vmul.f32 1.0, %v1123
    %v1125 = vrcp.pop %v1070
    %v1126 = vmul.f32 1.0, %v1125
    %v1127 = vrcp.pop %v1071
    %v1128 = vmul.f32 1.0, %v1127
    %v1129 = vrcp.pop %v1072
    %v1130 = vmul.f32 1.0, %v1129
    %v1131 = vrcp.pop %v1073
    %v1132 = vmul.f32 1.0, %v1131
    %v1133 = vrcp.pop %v1074
    %v1134 = vmul.f32 1.0, %v1133
    %v1135 = vrcp.pop %v1075
    %v1136 = vmul.f32 1.0, %v1135
    %v1137 = vrcp.pop %v1076
    %v1138 = vmul.f32 1.0, %v1137
    %v1139 = vrcp.pop %v1077
    %v1140 = vmul.f32 1.0, %v1139
    %v1141 = vrcp.pop %v1078
    %v1142 = vmul.f32 1.0, %v1141
    %1144 = vset.pattern.permute.xlu0 0
    %1145 = vperm.xlu0 %1144, %v1080
    %v1146 = vpop.permute.xlu0 %1145
    %1149 = vset.pattern.permute.xlu0 0
    %1150 = vperm.xlu0 %1149, %v1082
    %v1151 = vpop.permute.xlu0 %1150
    %1154 = vset.pattern.permute.xlu0 0
    %1155 = vperm.xlu0 %1154, %v1084
    %v1156 = vpop.permute.xlu0 %1155
    %1159 = vset.pattern.permute.xlu0 0
    %1160 = vperm.xlu0 %1159, %v1086
    %v1161 = vpop.permute.xlu0 %1160
    %1164 = vset.pattern.permute.xlu0 0
    %1165 = vperm.xlu0 %1164, %v1088
    %v1166 = vpop.permute.xlu0 %1165
    %1169 = vset.pattern.permute.xlu0 0
    %1170 = vperm.xlu0 %1169, %v1090
    %v1171 = vpop.permute.xlu0 %1170
    %1174 = vset.pattern.permute.xlu0 0
    %1175 = vperm.xlu0 %1174, %v1092
    %v1176 = vpop.permute.xlu0 %1175
    %1179 = vset.pattern.permute.xlu0 0
    %1180 = vperm.xlu0 %1179, %v1094
    %v1181 = vpop.permute.xlu0 %1180
    %1184 = vset.pattern.permute.xlu0 0
    %1185 = vperm.xlu0 %1184, %v1096
    %v1186 = vpop.permute.xlu0 %1185
    %1189 = vset.pattern.permute.xlu0 0
    %1190 = vperm.xlu0 %1189, %v1098
    %v1191 = vpop.permute.xlu0 %1190
    %1194 = vset.pattern.permute.xlu0 0
    %1195 = vperm.xlu0 %1194, %v1100
    %v1196 = vpop.permute.xlu0 %1195
    %1199 = vset.pattern.permute.xlu0 0
    %1200 = vperm.xlu0 %1199, %v1102
    %v1201 = vpop.permute.xlu0 %1200
    %1204 = vset.pattern.permute.xlu0 0
    %1205 = vperm.xlu0 %1204, %v1104
    %v1206 = vpop.permute.xlu0 %1205
    %1209 = vset.pattern.permute.xlu0 0
    %1210 = vperm.xlu0 %1209, %v1106
    %v1211 = vpop.permute.xlu0 %1210
    %1214 = vset.pattern.permute.xlu0 0
    %1215 = vperm.xlu0 %1214, %v1108
    %v1216 = vpop.permute.xlu0 %1215
    %1219 = vset.pattern.permute.xlu0 0
    %1220 = vperm.xlu0 %1219, %v1110
    %v1221 = vpop.permute.xlu0 %1220
    %1224 = vset.pattern.permute.xlu0 0
    %1225 = vperm.xlu0 %1224, %v1112
    %v1226 = vpop.permute.xlu0 %1225
    %1229 = vset.pattern.permute.xlu0 0
    %1230 = vperm.xlu0 %1229, %v1114
    %v1231 = vpop.permute.xlu0 %1230
    %1234 = vset.pattern.permute.xlu0 0
    %1235 = vperm.xlu0 %1234, %v1116
    %v1236 = vpop.permute.xlu0 %1235
    %1239 = vset.pattern.permute.xlu0 0
    %1240 = vperm.xlu0 %1239, %v1118
    %v1241 = vpop.permute.xlu0 %1240
    %1244 = vset.pattern.permute.xlu0 0
    %1245 = vperm.xlu0 %1244, %v1120
    %v1246 = vpop.permute.xlu0 %1245
    %1249 = vset.pattern.permute.xlu0 0
    %1250 = vperm.xlu0 %1249, %v1122
    %v1251 = vpop.permute.xlu0 %1250
    %1254 = vset.pattern.permute.xlu0 0
    %1255 = vperm.xlu0 %1254, %v1124
    %v1256 = vpop.permute.xlu0 %1255
    %1259 = vset.pattern.permute.xlu0 0
    %1260 = vperm.xlu0 %1259, %v1126
    %v1261 = vpop.permute.xlu0 %1260
    %1264 = vset.pattern.permute.xlu0 0
    %1265 = vperm.xlu0 %1264, %v1128
    %v1266 = vpop.permute.xlu0 %1265
    %1269 = vset.pattern.permute.xlu0 0
    %1270 = vperm.xlu0 %1269, %v1130
    %v1271 = vpop.permute.xlu0 %1270
    %1274 = vset.pattern.permute.xlu0 0
    %1275 = vperm.xlu0 %1274, %v1132
    %v1276 = vpop.permute.xlu0 %1275
    %1279 = vset.pattern.permute.xlu0 0
    %1280 = vperm.xlu0 %1279, %v1134
    %v1281 = vpop.permute.xlu0 %1280
    %1284 = vset.pattern.permute.xlu0 0
    %1285 = vperm.xlu0 %1284, %v1136
    %v1286 = vpop.permute.xlu0 %1285
    %1289 = vset.pattern.permute.xlu0 0
    %1290 = vperm.xlu0 %1289, %v1138
    %v1291 = vpop.permute.xlu0 %1290
    %1294 = vset.pattern.permute.xlu0 0
    %1295 = vperm.xlu0 %1294, %v1140
    %v1296 = vpop.permute.xlu0 %1295
    %1299 = vset.pattern.permute.xlu0 0
    %1300 = vperm.xlu0 %1299, %v1142
    %v1301 = vpop.permute.xlu0 %1300
    %v1303 = vmul.f32 %v65, %v1146
    %v1304 = vmul.f32 %v66, %v1151
    %v1305 = vmul.f32 %v67, %v1156
    %v1306 = vmul.f32 %v68, %v1161
    %v1307 = vmul.f32 %v69, %v1166
    %v1308 = vmul.f32 %v70, %v1171
    %v1309 = vmul.f32 %v71, %v1176
    %v1310 = vmul.f32 %v72, %v1181
    %v1311 = vmul.f32 %v73, %v1186
    %v1312 = vmul.f32 %v74, %v1191
    %v1313 = vmul.f32 %v75, %v1196
    %v1314 = vmul.f32 %v76, %v1201
    %v1315 = vmul.f32 %v77, %v1206
    %v1316 = vmul.f32 %v78, %v1211
    %v1317 = vmul.f32 %v79, %v1216
    %v1318 = vmul.f32 %v80, %v1221
    %v1319 = vmul.f32 %v81, %v1226
    %v1320 = vmul.f32 %v82, %v1231
    %v1321 = vmul.f32 %v83, %v1236
    %v1322 = vmul.f32 %v84, %v1241
    %v1323 = vmul.f32 %v85, %v1246
    %v1324 = vmul.f32 %v86, %v1251
    %v1325 = vmul.f32 %v87, %v1256
    %v1326 = vmul.f32 %v88, %v1261
    %v1327 = vmul.f32 %v89, %v1266
    %v1328 = vmul.f32 %v90, %v1271
    %v1329 = vmul.f32 %v91, %v1276
    %v1330 = vmul.f32 %v92, %v1281
    %v1331 = vmul.f32 %v93, %v1286
    %v1332 = vmul.f32 %v94, %v1291
    %v1333 = vmul.f32 %v95, %v1296
    %v1334 = vmul.f32 %v96, %v1301
    %v1335 = vsel %vm107, %v1303, 0.0
    %v1336 = vsel %vm107, %v1304, 0.0
    %v1337 = vadd.f32 %v1335, %v1336
    %v1338 = vrot.slane %v1337, 4
    %v1339 = vadd.f32 %v1337, %v1338
    %v1340 = vrot.slane %v1339, 2
    %v1341 = vadd.f32 %v1339, %v1340
    %v1342 = vrot.slane %v1341, 1
    %v1343 = vadd.f32 %v1341, %v1342
    %v1344 = vsel %vm107, %v1305, 0.0
    %v1345 = vsel %vm107, %v1306, 0.0
    %v1346 = vadd.f32 %v1344, %v1345
    %v1347 = vrot.slane %v1346, 4
    %v1348 = vadd.f32 %v1346, %v1347
    %v1349 = vrot.slane %v1348, 2
    %v1350 = vadd.f32 %v1348, %v1349
    %v1351 = vrot.slane %v1350, 1
    %v1352 = vadd.f32 %v1350, %v1351
    %v1353 = vsel %vm107, %v1307, 0.0
    %v1354 = vsel %vm107, %v1308, 0.0
    %v1355 = vadd.f32 %v1353, %v1354
    %v1356 = vrot.slane %v1355, 4
    %v1357 = vadd.f32 %v1355, %v1356
    %v1358 = vrot.slane %v1357, 2
    %v1359 = vadd.f32 %v1357, %v1358
    %v1360 = vrot.slane %v1359, 1
    %v1361 = vadd.f32 %v1359, %v1360
    %v1362 = vsel %vm107, %v1309, 0.0
    %v1363 = vsel %vm107, %v1310, 0.0
    %v1364 = vadd.f32 %v1362, %v1363
    %v1365 = vrot.slane %v1364, 4
    %v1366 = vadd.f32 %v1364, %v1365
    %v1367 = vrot.slane %v1366, 2
    %v1368 = vadd.f32 %v1366, %v1367
    %v1369 = vrot.slane %v1368, 1
    %v1370 = vadd.f32 %v1368, %v1369
    %v1371 = vsel %vm107, %v1311, 0.0
    %v1372 = vsel %vm107, %v1312, 0.0
    %v1373 = vadd.f32 %v1371, %v1372
    %v1374 = vrot.slane %v1373, 4
    %v1375 = vadd.f32 %v1373, %v1374
    %v1376 = vrot.slane %v1375, 2
    %v1377 = vadd.f32 %v1375, %v1376
    %v1378 = vrot.slane %v1377, 1
    %v1379 = vadd.f32 %v1377, %v1378
    %v1380 = vsel %vm107, %v1313, 0.0
    %v1381 = vsel %vm107, %v1314, 0.0
    %v1382 = vadd.f32 %v1380, %v1381
    %v1383 = vrot.slane %v1382, 4
    %v1384 = vadd.f32 %v1382, %v1383
    %v1385 = vrot.slane %v1384, 2
    %v1386 = vadd.f32 %v1384, %v1385
    %v1387 = vrot.slane %v1386, 1
    %v1388 = vadd.f32 %v1386, %v1387
    %v1389 = vsel %vm107, %v1315, 0.0
    %v1390 = vsel %vm107, %v1316, 0.0
    %v1391 = vadd.f32 %v1389, %v1390
    %v1392 = vrot.slane %v1391, 4
    %v1393 = vadd.f32 %v1391, %v1392
    %v1394 = vrot.slane %v1393, 2
    %v1395 = vadd.f32 %v1393, %v1394
    %v1396 = vrot.slane %v1395, 1
    %v1397 = vadd.f32 %v1395, %v1396
    %v1398 = vsel %vm107, %v1317, 0.0
    %v1399 = vsel %vm107, %v1318, 0.0
    %v1400 = vadd.f32 %v1398, %v1399
    %v1401 = vrot.slane %v1400, 4
    %v1402 = vadd.f32 %v1400, %v1401
    %v1403 = vrot.slane %v1402, 2
    %v1404 = vadd.f32 %v1402, %v1403
    %v1405 = vrot.slane %v1404, 1
    %v1406 = vadd.f32 %v1404, %v1405
    %v1407 = vsel %vm107, %v1319, 0.0
    %v1408 = vsel %vm107, %v1320, 0.0
    %v1409 = vadd.f32 %v1407, %v1408
    %v1410 = vrot.slane %v1409, 4
    %v1411 = vadd.f32 %v1409, %v1410
    %v1412 = vrot.slane %v1411, 2
    %v1413 = vadd.f32 %v1411, %v1412
    %v1414 = vrot.slane %v1413, 1
    %v1415 = vadd.f32 %v1413, %v1414
    %v1416 = vsel %vm107, %v1321, 0.0
    %v1417 = vsel %vm107, %v1322, 0.0
    %v1418 = vadd.f32 %v1416, %v1417
    %v1419 = vrot.slane %v1418, 4
    %v1420 = vadd.f32 %v1418, %v1419
    %v1421 = vrot.slane %v1420, 2
    %v1422 = vadd.f32 %v1420, %v1421
    %v1423 = vrot.slane %v1422, 1
    %v1424 = vadd.f32 %v1422, %v1423
    %v1425 = vsel %vm107, %v1323, 0.0
    %v1426 = vsel %vm107, %v1324, 0.0
    %v1427 = vadd.f32 %v1425, %v1426
    %v1428 = vrot.slane %v1427, 4
    %v1429 = vadd.f32 %v1427, %v1428
    %v1430 = vrot.slane %v1429, 2
    %v1431 = vadd.f32 %v1429, %v1430
    %v1432 = vrot.slane %v1431, 1
    %v1433 = vadd.f32 %v1431, %v1432
    %v1434 = vsel %vm107, %v1325, 0.0
    %v1435 = vsel %vm107, %v1326, 0.0
    %v1436 = vadd.f32 %v1434, %v1435
    %v1437 = vrot.slane %v1436, 4
    %v1438 = vadd.f32 %v1436, %v1437
    %v1439 = vrot.slane %v1438, 2
    %v1440 = vadd.f32 %v1438, %v1439
    %v1441 = vrot.slane %v1440, 1
    %v1442 = vadd.f32 %v1440, %v1441
    %v1443 = vsel %vm107, %v1327, 0.0
    %v1444 = vsel %vm107, %v1328, 0.0
    %v1445 = vadd.f32 %v1443, %v1444
    %v1446 = vrot.slane %v1445, 4
    %v1447 = vadd.f32 %v1445, %v1446
    %v1448 = vrot.slane %v1447, 2
    %v1449 = vadd.f32 %v1447, %v1448
    %v1450 = vrot.slane %v1449, 1
    %v1451 = vadd.f32 %v1449, %v1450
    %v1452 = vsel %vm107, %v1329, 0.0
    %v1453 = vsel %vm107, %v1330, 0.0
    %v1454 = vadd.f32 %v1452, %v1453
    %v1455 = vrot.slane %v1454, 4
    %v1456 = vadd.f32 %v1454, %v1455
    %v1457 = vrot.slane %v1456, 2
    %v1458 = vadd.f32 %v1456, %v1457
    %v1459 = vrot.slane %v1458, 1
    %v1460 = vadd.f32 %v1458, %v1459
    %v1461 = vsel %vm107, %v1331, 0.0
    %v1462 = vsel %vm107, %v1332, 0.0
    %v1463 = vadd.f32 %v1461, %v1462
    %v1464 = vrot.slane %v1463, 4
    %v1465 = vadd.f32 %v1463, %v1464
    %v1466 = vrot.slane %v1465, 2
    %v1467 = vadd.f32 %v1465, %v1466
    %v1468 = vrot.slane %v1467, 1
    %v1469 = vadd.f32 %v1467, %v1468
    %v1470 = vsel %vm107, %v1333, 0.0
    %v1471 = vsel %vm107, %v1334, 0.0
    %v1472 = vadd.f32 %v1470, %v1471
    %v1473 = vrot.slane %v1472, 4
    %v1474 = vadd.f32 %v1472, %v1473
    %v1475 = vrot.slane %v1474, 2
    %v1476 = vadd.f32 %v1474, %v1475
    %v1477 = vrot.slane %v1476, 1
    %v1478 = vadd.f32 %v1476, %v1477
    %v1479 = vmul.f32 %v1343, 0.0625
    %v1480 = vmul.f32 %v1352, 0.0625
    %v1481 = vmul.f32 %v1361, 0.0625
    %v1482 = vmul.f32 %v1370, 0.0625
    %v1483 = vmul.f32 %v1379, 0.0625
    %v1484 = vmul.f32 %v1388, 0.0625
    %v1485 = vmul.f32 %v1397, 0.0625
    %v1486 = vmul.f32 %v1406, 0.0625
    %v1487 = vmul.f32 %v1415, 0.0625
    %v1488 = vmul.f32 %v1424, 0.0625
    %v1489 = vmul.f32 %v1433, 0.0625
    %v1490 = vmul.f32 %v1442, 0.0625
    %v1491 = vmul.f32 %v1451, 0.0625
    %v1492 = vmul.f32 %v1460, 0.0625
    %v1493 = vmul.f32 %v1469, 0.0625
    %v1494 = vmul.f32 %v1478, 0.0625
    %v1511 = vsel %vm290, %v1480, %v1479
    %v1512 = vsel %vm292, %v1481, %v1511
    %v1513 = vsel %vm294, %v1482, %v1512
    %v1514 = vsel %vm296, %v1483, %v1513
    %v1515 = vsel %vm298, %v1484, %v1514
    %v1516 = vsel %vm300, %v1485, %v1515
    %v1517 = vsel %vm302, %v1486, %v1516
    %v1518 = vsel %vm290, %v1488, %v1487
    %v1519 = vsel %vm292, %v1489, %v1518
    %v1520 = vsel %vm294, %v1490, %v1519
    %v1521 = vsel %vm296, %v1491, %v1520
    %v1522 = vsel %vm298, %v1492, %v1521
    %v1523 = vsel %vm300, %v1493, %v1522
    %v1524 = vsel %vm302, %v1494, %v1523
    %1527 = vst.msk [vmem:[#allocation8] sm:$0xff] %vm107, %v1517
    %1528 = vst.msk [vmem:[#allocation8 + $0x8] sm:$0xff] %vm107, %v1524
    %v1529 = vlaneseq
    %v1530 = vand.u32 %v1529, 127
    %v1531 = vlaneseq
    %v1532 = vshrl.u32 %v1531, 7
    %v1533 = vsub.s32 %v1530, %v1532
    %v1534 = vrot.slane %v1146, %v1533
    %v1535 = vadd.s32 %v1530, 4294967288
    %v1536 = vlaneseq
    %v1537 = vshrl.u32 %v1536, 7
    %v1538 = vsub.s32 %v1535, %v1537
    %v1539 = vrot.slane %v1151, %v1538
    %vm1540 = vcmask 130112
    %v1541 = vsel %vm1540, %v1539, %v1534
    %v1542 = vlaneseq
    %v1543 = vshrl.u32 %v1542, 7
    %v1544 = vsub.s32 %v1530, %v1543
    %v1545 = vrot.slane %v1156, %v1544
    %v1546 = vlaneseq
    %v1547 = vshrl.u32 %v1546, 7
    %v1548 = vsub.s32 %v1535, %v1547
    %v1549 = vrot.slane %v1161, %v1548
    %v1550 = vsel %vm1540, %v1549, %v1545
    %v1551 = vlaneseq
    %v1552 = vshrl.u32 %v1551, 7
    %v1553 = vsub.s32 %v1530, %v1552
    %v1554 = vrot.slane %v1166, %v1553
    %v1555 = vlaneseq
    %v1556 = vshrl.u32 %v1555, 7
    %v1557 = vsub.s32 %v1535, %v1556
    %v1558 = vrot.slane %v1171, %v1557
    %v1559 = vsel %vm1540, %v1558, %v1554
    %v1560 = vlaneseq
    %v1561 = vshrl.u32 %v1560, 7
    %v1562 = vsub.s32 %v1530, %v1561
    %v1563 = vrot.slane %v1176, %v1562
    %v1564 = vlaneseq
    %v1565 = vshrl.u32 %v1564, 7
    %v1566 = vsub.s32 %v1535, %v1565
    %v1567 = vrot.slane %v1181, %v1566
    %v1568 = vsel %vm1540, %v1567, %v1563
    %v1569 = vlaneseq
    %v1570 = vshrl.u32 %v1569, 7
    %v1571 = vsub.s32 %v1530, %v1570
    %v1572 = vrot.slane %v1186, %v1571
    %v1573 = vlaneseq
    %v1574 = vshrl.u32 %v1573, 7
    %v1575 = vsub.s32 %v1535, %v1574
    %v1576 = vrot.slane %v1191, %v1575
    %v1577 = vsel %vm1540, %v1576, %v1572
    %v1578 = vlaneseq
    %v1579 = vshrl.u32 %v1578, 7
    %v1580 = vsub.s32 %v1530, %v1579
    %v1581 = vrot.slane %v1196, %v1580
    %v1582 = vlaneseq
    %v1583 = vshrl.u32 %v1582, 7
    %v1584 = vsub.s32 %v1535, %v1583
    %v1585 = vrot.slane %v1201, %v1584
    %v1586 = vsel %vm1540, %v1585, %v1581
    %v1587 = vlaneseq
    %v1588 = vshrl.u32 %v1587, 7
    %v1589 = vsub.s32 %v1530, %v1588
    %v1590 = vrot.slane %v1206, %v1589
    %v1591 = vlaneseq
    %v1592 = vshrl.u32 %v1591, 7
    %v1593 = vsub.s32 %v1535, %v1592
    %v1594 = vrot.slane %v1211, %v1593
    %v1595 = vsel %vm1540, %v1594, %v1590
    %v1596 = vlaneseq
    %v1597 = vshrl.u32 %v1596, 7
    %v1598 = vsub.s32 %v1530, %v1597
    %v1599 = vrot.slane %v1216, %v1598
    %v1600 = vlaneseq
    %v1601 = vshrl.u32 %v1600, 7
    %v1602 = vsub.s32 %v1535, %v1601
    %v1603 = vrot.slane %v1221, %v1602
    %v1604 = vsel %vm1540, %v1603, %v1599
    %v1605 = vlaneseq
    %v1606 = vshrl.u32 %v1605, 7
    %v1607 = vsub.s32 %v1530, %v1606
    %v1608 = vrot.slane %v1226, %v1607
    %v1609 = vlaneseq
    %v1610 = vshrl.u32 %v1609, 7
    %v1611 = vsub.s32 %v1535, %v1610
    %v1612 = vrot.slane %v1231, %v1611
    %v1613 = vsel %vm1540, %v1612, %v1608
    %v1614 = vlaneseq
    %v1615 = vshrl.u32 %v1614, 7
    %v1616 = vsub.s32 %v1530, %v1615
    %v1617 = vrot.slane %v1236, %v1616
    %v1618 = vlaneseq
    %v1619 = vshrl.u32 %v1618, 7
    %v1620 = vsub.s32 %v1535, %v1619
    %v1621 = vrot.slane %v1241, %v1620
    %v1622 = vsel %vm1540, %v1621, %v1617
    %v1623 = vlaneseq
    %v1624 = vshrl.u32 %v1623, 7
    %v1625 = vsub.s32 %v1530, %v1624
    %v1626 = vrot.slane %v1246, %v1625
    %v1627 = vlaneseq
    %v1628 = vshrl.u32 %v1627, 7
    %v1629 = vsub.s32 %v1535, %v1628
    %v1630 = vrot.slane %v1251, %v1629
    %v1631 = vsel %vm1540, %v1630, %v1626
    %v1632 = vlaneseq
    %v1633 = vshrl.u32 %v1632, 7
    %v1634 = vsub.s32 %v1530, %v1633
    %v1635 = vrot.slane %v1256, %v1634
    %v1636 = vlaneseq
    %v1637 = vshrl.u32 %v1636, 7
    %v1638 = vsub.s32 %v1535, %v1637
    %v1639 = vrot.slane %v1261, %v1638
    %v1640 = vsel %vm1540, %v1639, %v1635
    %v1641 = vlaneseq
    %v1642 = vshrl.u32 %v1641, 7
    %v1643 = vsub.s32 %v1530, %v1642
    %v1644 = vrot.slane %v1266, %v1643
    %v1645 = vlaneseq
    %v1646 = vshrl.u32 %v1645, 7
    %v1647 = vsub.s32 %v1535, %v1646
    %v1648 = vrot.slane %v1271, %v1647
    %v1649 = vsel %vm1540, %v1648, %v1644
    %v1650 = vlaneseq
    %v1651 = vshrl.u32 %v1650, 7
    %v1652 = vsub.s32 %v1530, %v1651
    %v1653 = vrot.slane %v1276, %v1652
    %v1654 = vlaneseq
    %v1655 = vshrl.u32 %v1654, 7
    %v1656 = vsub.s32 %v1535, %v1655
    %v1657 = vrot.slane %v1281, %v1656
    %v1658 = vsel %vm1540, %v1657, %v1653
    %v1659 = vlaneseq
    %v1660 = vshrl.u32 %v1659, 7
    %v1661 = vsub.s32 %v1530, %v1660
    %v1662 = vrot.slane %v1286, %v1661
    %v1663 = vlaneseq
    %v1664 = vshrl.u32 %v1663, 7
    %v1665 = vsub.s32 %v1535, %v1664
    %v1666 = vrot.slane %v1291, %v1665
    %v1667 = vsel %vm1540, %v1666, %v1662
    %v1668 = vlaneseq
    %v1669 = vshrl.u32 %v1668, 7
    %v1670 = vsub.s32 %v1530, %v1669
    %v1671 = vrot.slane %v1296, %v1670
    %v1672 = vlaneseq
    %v1673 = vshrl.u32 %v1672, 7
    %v1674 = vsub.s32 %v1535, %v1673
    %v1675 = vrot.slane %v1301, %v1674
    %v1676 = vsel %vm1540, %v1675, %v1671
    %v1677 = vsel %vm290, %v1550, %v1541
    %v1678 = vsel %vm292, %v1559, %v1677
    %v1679 = vsel %vm294, %v1568, %v1678
    %v1680 = vsel %vm296, %v1577, %v1679
    %v1681 = vsel %vm298, %v1586, %v1680
    %v1682 = vsel %vm300, %v1595, %v1681
    %v1683 = vsel %vm302, %v1604, %v1682
    %v1684 = vsel %vm290, %v1622, %v1613
    %v1685 = vsel %vm292, %v1631, %v1684
    %v1686 = vsel %vm294, %v1640, %v1685
    %v1687 = vsel %vm296, %v1649, %v1686
    %v1688 = vsel %vm298, %v1658, %v1687
    %v1689 = vsel %vm300, %v1667, %v1688
    %v1690 = vsel %vm302, %v1676, %v1689
    %vm1693 = vcmask 130048
    %1694 = vst.msk [vmem:[#allocation9] sm:$0xff] %vm1693, %v1683
    %1695 = vst.msk [vmem:[#allocation9 + $0x8] sm:$0xff] %vm1693, %v1690
    // Predicated region
    $region34: #{tpu_custom_call.1} parent=1 // pred_check
      _
    $region35: #{tpu_custom_call.1} parent=1 // pred_check_branch
      %1697 = sbr.rel (0) target = $region37
    $region36: #{tpu_custom_call.1} parent=1 // pred_region
      %s1699 = ssub.s32 256, 256
      %1700 = vsyncadd [#allocation4], %s1699
      %s1701 = sshll.u32 [#allocation8], 4
      %s1702 = int_to_ptr.vmem [resolvable:$true] %s1701
      %1707 = dma.vmem_to_hbm [thread:$0]  %s1702, 256, %s5, [#allocation4], 128, 128, 8
    $region37: #{tpu_custom_call.1} parent=1 // pred_fallthru
      _
    // Predicated region
    $region38: #{tpu_custom_call.1} parent=1 // pred_check
      _
    $region39: #{tpu_custom_call.1} parent=1 // pred_check_branch
      %1709 = sbr.rel (0) target = $region41
    $region40: #{tpu_custom_call.1} parent=1 // pred_region
      %s1711 = ssub.s32 256, 256
      %1712 = vsyncadd [#allocation10], %s1711
      %s1713 = sshll.u32 [#allocation9], 4
      %s1714 = int_to_ptr.vmem [resolvable:$true] %s1713
      %1719 = dma.vmem_to_hbm [thread:$0]  %s1714, 256, %s6, [#allocation10], 128, 128, 8
    $region41: #{tpu_custom_call.1} parent=1 // pred_fallthru
      _
    // Predicated region
    $region42: #{tpu_custom_call.1} parent=1 // pred_check
      _
    $region43: #{tpu_custom_call.1} parent=1 // pred_check_branch
      %1721 = sbr.rel (0) target = $region45
    $region44: #{tpu_custom_call.1} parent=1 // pred_region
      %1722 = dma.done [#allocation4], 256
    $region45: #{tpu_custom_call.1} parent=1 // pred_fallthru
      _
    // Predicated region
    $region46: #{tpu_custom_call.1} parent=1 // pred_check
      _
    $region47: #{tpu_custom_call.1} parent=1 // pred_check_branch
      %1724 = sbr.rel (0) target = $region49
    $region48: #{tpu_custom_call.1} parent=1 // pred_region
      %1725 = dma.done [#allocation10], 256
    $region49: #{tpu_custom_call.1} parent=1 // pred_fallthru
      _
    %1726 = vsyncpa [#allocation3], 1
    %1727 = vsyncpa [#allocation6], 1
    %1728 = vsyncpa [#allocation4], 1
    %1729 = vsyncpa [#allocation10], 1

</llo_original>
